<compile_context>
chip_gen: v5e
topology: v5e:2x2
jax: 0.10.0
libtpu: 0.0.40
codegen_flags: <defaults>
</compile_context>

<pallas_src>
import jax
import jax.numpy as jnp
from jax import lax
from jax.experimental import pallas as pl
from jax.experimental.pallas import tpu as pltpu


def _gru_encoder_kernel(x_ref, wih_ref, whh_ref, bgi_ref, bhn_ref,
                        wl_ref, bl_ref, out_ref, h_scr, gi_scr):
    """One batch tile x one time chunk of the GRU, plus the final Linear.

    x_ref  : (Tc, tb, D)   time-major input chunk
    wih_ref: (D, 3H)       fused input->hidden weights, gate columns r|z|n
    whh_ref: (H, 3H)       fused hidden->hidden weights, gate columns r|z|n
    bgi_ref: (1, 3H)       b_ih (+ b_hh for r,z gates) -- folded into Phase 1
    bhn_ref: (1, H)        b_hn (must stay inside the recurrence)
    wl_ref : (H, E)        linear weight (already transposed)
    bl_ref : (1, E)        linear bias
    out_ref: (tb, E)       output embedding tile (written on the last chunk)
    h_scr  : (tb, H)       f32 recurrent state, persists across time chunks
    gi_scr : (Tc, tb, 3H)  f32 precomputed input->gate activations
    """
    Tc, tb, D = x_ref.shape
    H = h_scr.shape[1]
    c = pl.program_id(1)

    # h0 = 0 (PyTorch default) at the first time chunk of every batch tile.
    @pl.when(c == 0)
    def _init():
        h_scr[...] = jnp.zeros_like(h_scr)

    # ---- Phase 1: fused input->gates matmul for this chunk (off the serial
    # chain).  One (Tc*tb, D) x (D, 3H) MXU pass; r/z hidden biases folded in.
    x2d = x_ref[...].reshape(Tc * tb, D)
    gi = jnp.dot(x2d, wih_ref[...],
                 preferred_element_type=jnp.float32) + bgi_ref[...]
    gi_scr[...] = gi.reshape(Tc, tb, 3 * H)

    # ---- Phase 2: serial recurrence.  ONE fused (tb,H) x (H,3H) matmul per
    # step; all weight/bias loads hoisted out of the loop.
    whh = whh_ref[...]
    bhn = bhn_ref[...]

    def step(t, carry):
        h = h_scr[...]                                             # (tb, H)
        gh = jnp.dot(h, whh, preferred_element_type=jnp.float32)   # (tb, 3H)
        gi_t = gi_scr[t]                                           # (tb, 3H)
        r = jax.nn.sigmoid(gi_t[:, :H] + gh[:, :H])
        z = jax.nn.sigmoid(gi_t[:, H:2 * H] + gh[:, H:2 * H])
        n = jnp.tanh(gi_t[:, 2 * H:] + r * (gh[:, 2 * H:] + bhn))
        h_scr[...] = (1.0 - z) * n + z * h
        return carry

    lax.fori_loop(0, Tc, step, 0, unroll=min(Tc, 8))

    # ---- Phase 3: final linear projection, only after the last time chunk.
    @pl.when(c == pl.num_programs(1) - 1)
    def _final():
        out = jnp.dot(h_scr[...], wl_ref[...],
                      preferred_element_type=jnp.float32) + bl_ref[...]
        out_ref[...] = out.astype(out_ref.dtype)


def _tensorcores_per_chip():
    """Best-effort guess at TensorCores addressable by one Pallas program."""
    try:
        kind = jax.devices()[0].device_kind.lower()
    except Exception:
        return 1
    return 2 if any(tag in kind for tag in ("v7", "v4", "v5p")) else 1


def _choose_batch_tile(b_pad, shards):
    """Largest batch tile (multiple of 8, <=128) dividing b_pad that yields at
    least `shards` grid steps; falls back to one full-batch tile."""
    cand = min(128, b_pad)
    while cand >= 8:
        if b_pad % cand == 0 and (b_pad // cand) >= shards:
            return cand
        cand -= 8
    return b_pad


def _choose_time_chunk(seq_len, tb, input_dim, hidden_dim, budget_bytes=6 << 20):
    """Largest divisor of seq_len whose gi scratch + x tile stays under budget
    (protects v7x's 64 MiB VMEM for long sequences)."""
    per_step = tb * (3 * hidden_dim + 2 * input_dim) * 4
    max_tc = max(1, budget_bytes // max(per_step, 1))
    tc = 1
    for cand in range(1, seq_len + 1):
        if seq_len % cand == 0 and cand <= max_tc:
            tc = cand
    return tc


def encoder_forward(x_btd, params, *, batch_tile=None, time_chunk=None):
    """x_btd: (B, T, D) batch-first input (PyTorch convention)."""
    w_ih, w_hh, b_ih, b_hh, w_lin, b_lin = params
    B, T, D = x_btd.shape
    H = w_hh.shape[1]
    E = w_lin.shape[0]

    # Pad batch to a multiple of 8 so in-kernel leading-dim reshapes stay
    # sublane-tile aligned and batch tiles satisfy the (8, 128) block rule.
    B_pad = ((B + 7) // 8) * 8
    if B_pad != B:
        x_btd = jnp.pad(x_btd, ((0, B_pad - B), (0, 0), (0, 0)))

    tb = batch_tile if batch_tile is not None else _choose_batch_tile(
        B_pad, _tensorcores_per_chip())
    assert tb % 8 == 0 and B_pad % tb == 0
    Tc = time_chunk if time_chunk is not None else _choose_time_chunk(T, tb, D, H)
    assert T % Tc == 0

    # Time-major input so the kernel indexes time on the leading (untiled) dim.
    # NOTE: at production shapes this transpose is one extra HBM pass over x;
    # fold it into the producer if x can be supplied time-major.
    x_tbd = jnp.transpose(x_btd, (1, 0, 2))                  # (T, B_pad, D)

    # Fused, matmul-friendly weight layouts (gate column order r | z | n).
    wih_f = jnp.transpose(w_ih)                               # (D, 3H)
    whh_f = jnp.transpose(w_hh)                               # (H, 3H)
    # Fold b_ih (all gates) and b_hh (r, z gates only) into Phase 1; b_hn must
    # remain inside the loop (PyTorch: n = tanh(i_n + b_in + r*(h_n + b_hn))).
    b_gi = (b_ih + jnp.concatenate(
        [b_hh[:2 * H], jnp.zeros((H,), b_hh.dtype)])).reshape(1, 3 * H)
    b_hn = b_hh[2 * H:].reshape(1, H)
    wl_t = jnp.transpose(w_lin)                               # (H, E)
    bl2d = b_lin.reshape(1, E)

    grid = (B_pad // tb, T // Tc)

    # Rough VMEM need (weights counted double-buffered to stay conservative).
    need_bytes = 4 * (2 * Tc * tb * D + Tc * tb * 3 * H + tb * H
                      + 2 * (D * 3 * H + H * 3 * H + 4 * H + H * E + E)
                      + 2 * tb * E)
    vmem_limit = int(min(100 * 1024 * 1024,
                         max(32 * 1024 * 1024, 2 * need_bytes)))

    def build(single_buffer_weights):
        const_map = lambda i, c: (0, 0)
        if single_buffer_weights:
            # Constant-index weights never change across the grid: keep a single
            # VMEM copy instead of the default double buffer.
            w_spec = lambda shape: pl.BlockSpec(shape, const_map,
                                                pipeline_mode=pl.Buffered(1))
        else:
            w_spec = lambda shape: pl.BlockSpec(shape, const_map)
        return pl.pallas_call(
            _gru_encoder_kernel,
            out_shape=jax.ShapeDtypeStruct((B_pad, E), x_btd.dtype),
            grid_spec=pltpu.PrefetchScalarGridSpec(
                num_scalar_prefetch=0,
                grid=grid,
                in_specs=[
                    pl.BlockSpec((Tc, tb, D), lambda i, c: (c, i, 0)),  # x chunk
                    w_spec((D, 3 * H)),                                  # W_ih fused
                    w_spec((H, 3 * H)),                                  # W_hh fused
                    w_spec((1, 3 * H)),                                  # Phase-1 bias
                    w_spec((1, H)),                                      # b_hn
                    w_spec((H, E)),                                      # W_lin^T
                    w_spec((1, E)),                                      # b_lin
                ],
                out_specs=pl.BlockSpec((tb, E), lambda i, c: (i, 0)),
                scratch_shapes=[
                    pltpu.VMEM((tb, H), jnp.float32),           # h (carried over c)
                    pltpu.VMEM((Tc, tb, 3 * H), jnp.float32),   # fused gi
                ],
            ),
            compiler_params=pltpu.CompilerParams(
                dimension_semantics=("parallel", "arbitrary"),
                vmem_limit_bytes=vmem_limit,
            ),
        )

    args = (x_tbd, wih_f, whh_f, b_gi, b_hn, wl_t, bl2d)
    try:
        out = build(True)(*args)
    except Exception:
        # Fallback for jax versions without pipeline_mode / Buffered(1) support.
        out = build(False)(*args)
    return out[:B]


def _reference_forward(x_btd, params):
    """Pure-JAX reference implementing the PyTorch GRU equations."""
    w_ih, w_hh, b_ih, b_hh, w_lin, b_lin = params
    H = w_hh.shape[1]

    def cell(h, x_t):
        gi = x_t @ w_ih.T + b_ih
        gh = h @ w_hh.T + b_hh
        i_r, i_z, i_n = gi[:, :H], gi[:, H:2 * H], gi[:, 2 * H:]
        h_r, h_z, h_n = gh[:, :H], gh[:, H:2 * H], gh[:, 2 * H:]
        r = jax.nn.sigmoid(i_r + h_r)
        z = jax.nn.sigmoid(i_z + h_z)
        n = jnp.tanh(i_n + r * h_n)
        h_new = (1.0 - z) * n + z * h
        return h_new, None

    B = x_btd.shape[0]
    h0 = jnp.zeros((B, H), jnp.float32)
    x_tbd = jnp.transpose(x_btd, (1, 0, 2))
    h_last, _ = lax.scan(cell, h0, x_tbd)
    return h_last @ w_lin.T + b_lin


if __name__ == "__main__":
    # Small shapes implied by the module: (batch, seq_len, input_dim) input.
    B, T, D, H, E = 8, 8, 16, 32, 16

    key = jax.random.PRNGKey(0)
    kx, k1, k2, k3, k4, k5, k6 = jax.random.split(key, 7)

    # Deterministic PyTorch-style uniform(-1/sqrt(H), 1/sqrt(H)) init.
    s = 1.0 / jnp.sqrt(jnp.float32(H))
    w_ih = jax.random.uniform(k1, (3 * H, D), jnp.float32, -s, s)   # weight_ih_l0
    w_hh = jax.random.uniform(k2, (3 * H, H), jnp.float32, -s, s)   # weight_hh_l0
    b_ih = jax.random.uniform(k3, (3 * H,), jnp.float32, -s, s)     # bias_ih_l0
    b_hh = jax.random.uniform(k4, (3 * H,), jnp.float32, -s, s)     # bias_hh_l0
    w_lin = jax.random.uniform(k5, (E, H), jnp.float32, -s, s)      # linear.weight
    b_lin = jax.random.uniform(k6, (E,), jnp.float32, -s, s)        # linear.bias
    params = (w_ih, w_hh, b_ih, b_hh, w_lin, b_lin)

    x = jax.random.normal(kx, (B, T, D), jnp.float32)

    out = jax.block_until_ready(encoder_forward(x, params))
    ref = jax.block_until_ready(_reference_forward(x, params))

    assert out.shape == (B, E)
    assert jnp.allclose(out, ref, rtol=1e-4, atol=1e-4), "mismatch vs reference"

    print("KERNEL_OK")
</pallas_src>

<mosaic_0001>
module attributes {stable_mosaic.version = 11 : i64} {
  func.func @_gru_encoder_kernel(%arg0: i32, %arg1: i32, %arg2: memref<8x8x16xf32, #tpu.memory_space<vmem>>, %arg3: memref<16x96xf32, #tpu.memory_space<vmem>>, %arg4: memref<32x96xf32, #tpu.memory_space<vmem>>, %arg5: memref<1x96xf32, #tpu.memory_space<vmem>>, %arg6: memref<1x32xf32, #tpu.memory_space<vmem>>, %arg7: memref<32x16xf32, #tpu.memory_space<vmem>>, %arg8: memref<1x16xf32, #tpu.memory_space<vmem>>, %arg9: memref<8x16xf32, #tpu.memory_space<vmem>>, %arg10: memref<8x32xf32, #tpu.memory_space<vmem>>, %arg11: memref<8x8x96xf32, #tpu.memory_space<vmem>>) attributes {dimension_semantics = [#tpu.dimension_semantics<parallel>, #tpu.dimension_semantics<arbitrary>], iteration_bounds = array<i64: 1, 1>, scalar_prefetch = 0 : i64, scratch_operands = 2 : i64, tpu.core_type = #tpu.core_type<tc>, window_params = [{transform_indices = @transform_0, window_bounds = array<i64: 8, 8, 16>}, {pipeline_mode = #tpu.pipeline_mode<synchronous>, transform_indices = @transform_1, window_bounds = array<i64: 16, 96>}, {pipeline_mode = #tpu.pipeline_mode<synchronous>, transform_indices = @transform_2, window_bounds = array<i64: 32, 96>}, {pipeline_mode = #tpu.pipeline_mode<synchronous>, transform_indices = @transform_3, window_bounds = array<i64: 1, 96>}, {pipeline_mode = #tpu.pipeline_mode<synchronous>, transform_indices = @transform_4, window_bounds = array<i64: 1, 32>}, {pipeline_mode = #tpu.pipeline_mode<synchronous>, transform_indices = @transform_5, window_bounds = array<i64: 32, 16>}, {pipeline_mode = #tpu.pipeline_mode<synchronous>, transform_indices = @transform_6, window_bounds = array<i64: 1, 16>}, {transform_indices = @transform_7, window_bounds = array<i64: 8, 16>}]} {
    %c0_i32 = arith.constant 0 : i32
    %0 = arith.cmpi eq, %arg1, %c0_i32 : i32
    %1 = arith.extui %0 : i1 to i32
    %c0_i32_0 = arith.constant 0 : i32
    %2 = arith.cmpi ne, %1, %c0_i32_0 : i32
    scf.if %2 {
      %cst_97 = arith.constant 0.000000e+00 : f32
      %289 = vector.broadcast %cst_97 : f32 to vector<8x32xf32>
      %c0_98 = arith.constant 0 : index
      %c0_99 = arith.constant 0 : index
      %290 = vector.load %arg10[%c0_98, %c0_99] : memref<8x32xf32, #tpu.memory_space<vmem>>, vector<8x32xf32>
      tpu.vector_store %arg10[%c0_98, %c0_99], %289 {strides = array<i32>} : memref<8x32xf32, #tpu.memory_space<vmem>>, vector<8x32xf32>,
    } else {
    }
    %c0 = arith.constant 0 : index
    %c0_1 = arith.constant 0 : index
    %c0_2 = arith.constant 0 : index
    %3 = vector.load %arg2[%c0, %c0_1, %c0_2] : memref<8x8x16xf32, #tpu.memory_space<vmem>>, vector<8x8x16xf32>
    %4 = vector.shape_cast %3 : vector<8x8x16xf32> to vector<64x16xf32>
    %c0_3 = arith.constant 0 : index
    %c0_4 = arith.constant 0 : index
    %5 = vector.load %arg3[%c0_3, %c0_4] : memref<16x96xf32, #tpu.memory_space<vmem>>, vector<16x96xf32>
    %cst = arith.constant dense<0.000000e+00> : vector<64x96xf32>
    %6 = tpu.matmul %4, %5, %cst {dimension_numbers = #tpu.dot_dimension_numbers<[1], [0], [0], [1], [0, 0, 1, 1], [], []>} : vector<64x16xf32>, vector<16x96xf32>, vector<64x96xf32> -> vector<64x96xf32>
    %c0_5 = arith.constant 0 : index
    %c0_6 = arith.constant 0 : index
    %7 = vector.load %arg5[%c0_5, %c0_6] : memref<1x96xf32, #tpu.memory_space<vmem>>, vector<1x96xf32>
    %8 = vector.broadcast %7 : vector<1x96xf32> to vector<64x96xf32>
    %9 = arith.addf %6, %8 : vector<64x96xf32>
    %10 = vector.shape_cast %9 : vector<64x96xf32> to vector<8x8x96xf32>
    %c0_7 = arith.constant 0 : index
    %c0_8 = arith.constant 0 : index
    %c0_9 = arith.constant 0 : index
    %11 = vector.load %arg11[%c0_7, %c0_8, %c0_9] : memref<8x8x96xf32, #tpu.memory_space<vmem>>, vector<8x8x96xf32>
    tpu.vector_store %arg11[%c0_7, %c0_8, %c0_9], %10 {strides = array<i32>} : memref<8x8x96xf32, #tpu.memory_space<vmem>>, vector<8x8x96xf32>,
    %c0_10 = arith.constant 0 : index
    %c0_11 = arith.constant 0 : index
    %12 = vector.load %arg4[%c0_10, %c0_11] : memref<32x96xf32, #tpu.memory_space<vmem>>, vector<32x96xf32>
    %c0_12 = arith.constant 0 : index
    %c0_13 = arith.constant 0 : index
    %13 = vector.load %arg6[%c0_12, %c0_13] : memref<1x32xf32, #tpu.memory_space<vmem>>, vector<1x32xf32>
    %c0_i32_14 = arith.constant 0 : i32
    %c0_15 = arith.constant 0 : index
    %c0_16 = arith.constant 0 : index
    %14 = vector.load %arg10[%c0_15, %c0_16] : memref<8x32xf32, #tpu.memory_space<vmem>>, vector<8x32xf32>
    %cst_17 = arith.constant dense<0.000000e+00> : vector<8x96xf32>
    %15 = tpu.matmul %14, %12, %cst_17 {dimension_numbers = #tpu.dot_dimension_numbers<[1], [0], [0], [1], [0, 0, 1, 1], [], []>} : vector<8x32xf32>, vector<32x96xf32>, vector<8x96xf32> -> vector<8x96xf32>
    %16 = arith.index_cast %c0_i32_14 : i32 to index
    %c0_18 = arith.constant 0 : index
    %c0_19 = arith.constant 0 : index
    %17 = vector.load %arg11[%16, %c0_18, %c0_19] : memref<8x8x96xf32, #tpu.memory_space<vmem>>, vector<1x8x96xf32>
    %18 = vector.shape_cast %17 : vector<1x8x96xf32> to vector<8x96xf32>
    %19 = vector.extract_strided_slice %18 {offsets = [0, 0], sizes = [8, 32], strides = [1, 1]} : vector<8x96xf32> to vector<8x32xf32>
    %20 = vector.extract_strided_slice %15 {offsets = [0, 0], sizes = [8, 32], strides = [1, 1]} : vector<8x96xf32> to vector<8x32xf32>
    %21 = arith.addf %19, %20 : vector<8x32xf32>
    %22 = arith.negf %21 : vector<8x32xf32>
    %23 = math.exp %22 : vector<8x32xf32>
    %cst_20 = arith.constant 1.000000e+00 : f32
    %24 = vector.broadcast %cst_20 : f32 to vector<8x32xf32>
    %25 = arith.addf %24, %23 : vector<8x32xf32>
    %26 = arith.divf %24, %25 : vector<8x32xf32>
    %27 = vector.extract_strided_slice %18 {offsets = [0, 32], sizes = [8, 32], strides = [1, 1]} : vector<8x96xf32> to vector<8x32xf32>
    %28 = vector.extract_strided_slice %15 {offsets = [0, 32], sizes = [8, 32], strides = [1, 1]} : vector<8x96xf32> to vector<8x32xf32>
    %29 = arith.addf %27, %28 : vector<8x32xf32>
    %30 = arith.negf %29 : vector<8x32xf32>
    %31 = math.exp %30 : vector<8x32xf32>
    %cst_21 = arith.constant 1.000000e+00 : f32
    %32 = vector.broadcast %cst_21 : f32 to vector<8x32xf32>
    %33 = arith.addf %32, %31 : vector<8x32xf32>
    %34 = arith.divf %32, %33 : vector<8x32xf32>
    %35 = vector.extract_strided_slice %18 {offsets = [0, 64], sizes = [8, 32], strides = [1, 1]} : vector<8x96xf32> to vector<8x32xf32>
    %36 = vector.extract_strided_slice %15 {offsets = [0, 64], sizes = [8, 32], strides = [1, 1]} : vector<8x96xf32> to vector<8x32xf32>
    %37 = vector.broadcast %13 : vector<1x32xf32> to vector<8x32xf32>
    %38 = arith.addf %36, %37 : vector<8x32xf32>
    %39 = arith.mulf %26, %38 : vector<8x32xf32>
    %40 = arith.addf %35, %39 : vector<8x32xf32>
    %41 = math.tanh %40 : vector<8x32xf32>
    %cst_22 = arith.constant 1.000000e+00 : f32
    %42 = vector.broadcast %cst_22 : f32 to vector<8x32xf32>
    %43 = arith.subf %42, %34 : vector<8x32xf32>
    %44 = arith.mulf %43, %41 : vector<8x32xf32>
    %45 = arith.mulf %34, %14 : vector<8x32xf32>
    %46 = arith.addf %44, %45 : vector<8x32xf32>
    %c0_23 = arith.constant 0 : index
    %c0_24 = arith.constant 0 : index
    %47 = vector.load %arg10[%c0_23, %c0_24] : memref<8x32xf32, #tpu.memory_space<vmem>>, vector<8x32xf32>
    tpu.vector_store %arg10[%c0_23, %c0_24], %46 {strides = array<i32>} : memref<8x32xf32, #tpu.memory_space<vmem>>, vector<8x32xf32>,
    %c1_i32 = arith.constant 1 : i32
    %c0_25 = arith.constant 0 : index
    %c0_26 = arith.constant 0 : index
    %48 = vector.load %arg10[%c0_25, %c0_26] : memref<8x32xf32, #tpu.memory_space<vmem>>, vector<8x32xf32>
    %cst_27 = arith.constant dense<0.000000e+00> : vector<8x96xf32>
    %49 = tpu.matmul %48, %12, %cst_27 {dimension_numbers = #tpu.dot_dimension_numbers<[1], [0], [0], [1], [0, 0, 1, 1], [], []>} : vector<8x32xf32>, vector<32x96xf32>, vector<8x96xf32> -> vector<8x96xf32>
    %50 = arith.index_cast %c1_i32 : i32 to index
    %c0_28 = arith.constant 0 : index
    %c0_29 = arith.constant 0 : index
    %51 = vector.load %arg11[%50, %c0_28, %c0_29] : memref<8x8x96xf32, #tpu.memory_space<vmem>>, vector<1x8x96xf32>
    %52 = vector.shape_cast %51 : vector<1x8x96xf32> to vector<8x96xf32>
    %53 = vector.extract_strided_slice %52 {offsets = [0, 0], sizes = [8, 32], strides = [1, 1]} : vector<8x96xf32> to vector<8x32xf32>
    %54 = vector.extract_strided_slice %49 {offsets = [0, 0], sizes = [8, 32], strides = [1, 1]} : vector<8x96xf32> to vector<8x32xf32>
    %55 = arith.addf %53, %54 : vector<8x32xf32>
    %56 = arith.negf %55 : vector<8x32xf32>
    %57 = math.exp %56 : vector<8x32xf32>
    %cst_30 = arith.constant 1.000000e+00 : f32
    %58 = vector.broadcast %cst_30 : f32 to vector<8x32xf32>
    %59 = arith.addf %58, %57 : vector<8x32xf32>
    %60 = arith.divf %58, %59 : vector<8x32xf32>
    %61 = vector.extract_strided_slice %52 {offsets = [0, 32], sizes = [8, 32], strides = [1, 1]} : vector<8x96xf32> to vector<8x32xf32>
    %62 = vector.extract_strided_slice %49 {offsets = [0, 32], sizes = [8, 32], strides = [1, 1]} : vector<8x96xf32> to vector<8x32xf32>
    %63 = arith.addf %61, %62 : vector<8x32xf32>
    %64 = arith.negf %63 : vector<8x32xf32>
    %65 = math.exp %64 : vector<8x32xf32>
    %cst_31 = arith.constant 1.000000e+00 : f32
    %66 = vector.broadcast %cst_31 : f32 to vector<8x32xf32>
    %67 = arith.addf %66, %65 : vector<8x32xf32>
    %68 = arith.divf %66, %67 : vector<8x32xf32>
    %69 = vector.extract_strided_slice %52 {offsets = [0, 64], sizes = [8, 32], strides = [1, 1]} : vector<8x96xf32> to vector<8x32xf32>
    %70 = vector.extract_strided_slice %49 {offsets = [0, 64], sizes = [8, 32], strides = [1, 1]} : vector<8x96xf32> to vector<8x32xf32>
    %71 = vector.broadcast %13 : vector<1x32xf32> to vector<8x32xf32>
    %72 = arith.addf %70, %71 : vector<8x32xf32>
    %73 = arith.mulf %60, %72 : vector<8x32xf32>
    %74 = arith.addf %69, %73 : vector<8x32xf32>
    %75 = math.tanh %74 : vector<8x32xf32>
    %cst_32 = arith.constant 1.000000e+00 : f32
    %76 = vector.broadcast %cst_32 : f32 to vector<8x32xf32>
    %77 = arith.subf %76, %68 : vector<8x32xf32>
    %78 = arith.mulf %77, %75 : vector<8x32xf32>
    %79 = arith.mulf %68, %48 : vector<8x32xf32>
    %80 = arith.addf %78, %79 : vector<8x32xf32>
    %c0_33 = arith.constant 0 : index
    %c0_34 = arith.constant 0 : index
    %81 = vector.load %arg10[%c0_33, %c0_34] : memref<8x32xf32, #tpu.memory_space<vmem>>, vector<8x32xf32>
    tpu.vector_store %arg10[%c0_33, %c0_34], %80 {strides = array<i32>} : memref<8x32xf32, #tpu.memory_space<vmem>>, vector<8x32xf32>,
    %c2_i32 = arith.constant 2 : i32
    %c0_35 = arith.constant 0 : index
    %c0_36 = arith.constant 0 : index
    %82 = vector.load %arg10[%c0_35, %c0_36] : memref<8x32xf32, #tpu.memory_space<vmem>>, vector<8x32xf32>
    %cst_37 = arith.constant dense<0.000000e+00> : vector<8x96xf32>
    %83 = tpu.matmul %82, %12, %cst_37 {dimension_numbers = #tpu.dot_dimension_numbers<[1], [0], [0], [1], [0, 0, 1, 1], [], []>} : vector<8x32xf32>, vector<32x96xf32>, vector<8x96xf32> -> vector<8x96xf32>
    %84 = arith.index_cast %c2_i32 : i32 to index
    %c0_38 = arith.constant 0 : index
    %c0_39 = arith.constant 0 : index
    %85 = vector.load %arg11[%84, %c0_38, %c0_39] : memref<8x8x96xf32, #tpu.memory_space<vmem>>, vector<1x8x96xf32>
    %86 = vector.shape_cast %85 : vector<1x8x96xf32> to vector<8x96xf32>
    %87 = vector.extract_strided_slice %86 {offsets = [0, 0], sizes = [8, 32], strides = [1, 1]} : vector<8x96xf32> to vector<8x32xf32>
    %88 = vector.extract_strided_slice %83 {offsets = [0, 0], sizes = [8, 32], strides = [1, 1]} : vector<8x96xf32> to vector<8x32xf32>
    %89 = arith.addf %87, %88 : vector<8x32xf32>
    %90 = arith.negf %89 : vector<8x32xf32>
    %91 = math.exp %90 : vector<8x32xf32>
    %cst_40 = arith.constant 1.000000e+00 : f32
    %92 = vector.broadcast %cst_40 : f32 to vector<8x32xf32>
    %93 = arith.addf %92, %91 : vector<8x32xf32>
    %94 = arith.divf %92, %93 : vector<8x32xf32>
    %95 = vector.extract_strided_slice %86 {offsets = [0, 32], sizes = [8, 32], strides = [1, 1]} : vector<8x96xf32> to vector<8x32xf32>
    %96 = vector.extract_strided_slice %83 {offsets = [0, 32], sizes = [8, 32], strides = [1, 1]} : vector<8x96xf32> to vector<8x32xf32>
    %97 = arith.addf %95, %96 : vector<8x32xf32>
    %98 = arith.negf %97 : vector<8x32xf32>
    %99 = math.exp %98 : vector<8x32xf32>
    %cst_41 = arith.constant 1.000000e+00 : f32
    %100 = vector.broadcast %cst_41 : f32 to vector<8x32xf32>
    %101 = arith.addf %100, %99 : vector<8x32xf32>
    %102 = arith.divf %100, %101 : vector<8x32xf32>
    %103 = vector.extract_strided_slice %86 {offsets = [0, 64], sizes = [8, 32], strides = [1, 1]} : vector<8x96xf32> to vector<8x32xf32>
    %104 = vector.extract_strided_slice %83 {offsets = [0, 64], sizes = [8, 32], strides = [1, 1]} : vector<8x96xf32> to vector<8x32xf32>
    %105 = vector.broadcast %13 : vector<1x32xf32> to vector<8x32xf32>
    %106 = arith.addf %104, %105 : vector<8x32xf32>
    %107 = arith.mulf %94, %106 : vector<8x32xf32>
    %108 = arith.addf %103, %107 : vector<8x32xf32>
    %109 = math.tanh %108 : vector<8x32xf32>
    %cst_42 = arith.constant 1.000000e+00 : f32
    %110 = vector.broadcast %cst_42 : f32 to vector<8x32xf32>
    %111 = arith.subf %110, %102 : vector<8x32xf32>
    %112 = arith.mulf %111, %109 : vector<8x32xf32>
    %113 = arith.mulf %102, %82 : vector<8x32xf32>
    %114 = arith.addf %112, %113 : vector<8x32xf32>
    %c0_43 = arith.constant 0 : index
    %c0_44 = arith.constant 0 : index
    %115 = vector.load %arg10[%c0_43, %c0_44] : memref<8x32xf32, #tpu.memory_space<vmem>>, vector<8x32xf32>
    tpu.vector_store %arg10[%c0_43, %c0_44], %114 {strides = array<i32>} : memref<8x32xf32, #tpu.memory_space<vmem>>, vector<8x32xf32>,
    %c3_i32 = arith.constant 3 : i32
    %c0_45 = arith.constant 0 : index
    %c0_46 = arith.constant 0 : index
    %116 = vector.load %arg10[%c0_45, %c0_46] : memref<8x32xf32, #tpu.memory_space<vmem>>, vector<8x32xf32>
    %cst_47 = arith.constant dense<0.000000e+00> : vector<8x96xf32>
    %117 = tpu.matmul %116, %12, %cst_47 {dimension_numbers = #tpu.dot_dimension_numbers<[1], [0], [0], [1], [0, 0, 1, 1], [], []>} : vector<8x32xf32>, vector<32x96xf32>, vector<8x96xf32> -> vector<8x96xf32>
    %118 = arith.index_cast %c3_i32 : i32 to index
    %c0_48 = arith.constant 0 : index
    %c0_49 = arith.constant 0 : index
    %119 = vector.load %arg11[%118, %c0_48, %c0_49] : memref<8x8x96xf32, #tpu.memory_space<vmem>>, vector<1x8x96xf32>
    %120 = vector.shape_cast %119 : vector<1x8x96xf32> to vector<8x96xf32>
    %121 = vector.extract_strided_slice %120 {offsets = [0, 0], sizes = [8, 32], strides = [1, 1]} : vector<8x96xf32> to vector<8x32xf32>
    %122 = vector.extract_strided_slice %117 {offsets = [0, 0], sizes = [8, 32], strides = [1, 1]} : vector<8x96xf32> to vector<8x32xf32>
    %123 = arith.addf %121, %122 : vector<8x32xf32>
    %124 = arith.negf %123 : vector<8x32xf32>
    %125 = math.exp %124 : vector<8x32xf32>
    %cst_50 = arith.constant 1.000000e+00 : f32
    %126 = vector.broadcast %cst_50 : f32 to vector<8x32xf32>
    %127 = arith.addf %126, %125 : vector<8x32xf32>
    %128 = arith.divf %126, %127 : vector<8x32xf32>
    %129 = vector.extract_strided_slice %120 {offsets = [0, 32], sizes = [8, 32], strides = [1, 1]} : vector<8x96xf32> to vector<8x32xf32>
    %130 = vector.extract_strided_slice %117 {offsets = [0, 32], sizes = [8, 32], strides = [1, 1]} : vector<8x96xf32> to vector<8x32xf32>
    %131 = arith.addf %129, %130 : vector<8x32xf32>
    %132 = arith.negf %131 : vector<8x32xf32>
    %133 = math.exp %132 : vector<8x32xf32>
    %cst_51 = arith.constant 1.000000e+00 : f32
    %134 = vector.broadcast %cst_51 : f32 to vector<8x32xf32>
    %135 = arith.addf %134, %133 : vector<8x32xf32>
    %136 = arith.divf %134, %135 : vector<8x32xf32>
    %137 = vector.extract_strided_slice %120 {offsets = [0, 64], sizes = [8, 32], strides = [1, 1]} : vector<8x96xf32> to vector<8x32xf32>
    %138 = vector.extract_strided_slice %117 {offsets = [0, 64], sizes = [8, 32], strides = [1, 1]} : vector<8x96xf32> to vector<8x32xf32>
    %139 = vector.broadcast %13 : vector<1x32xf32> to vector<8x32xf32>
    %140 = arith.addf %138, %139 : vector<8x32xf32>
    %141 = arith.mulf %128, %140 : vector<8x32xf32>
    %142 = arith.addf %137, %141 : vector<8x32xf32>
    %143 = math.tanh %142 : vector<8x32xf32>
    %cst_52 = arith.constant 1.000000e+00 : f32
    %144 = vector.broadcast %cst_52 : f32 to vector<8x32xf32>
    %145 = arith.subf %144, %136 : vector<8x32xf32>
    %146 = arith.mulf %145, %143 : vector<8x32xf32>
    %147 = arith.mulf %136, %116 : vector<8x32xf32>
    %148 = arith.addf %146, %147 : vector<8x32xf32>
    %c0_53 = arith.constant 0 : index
    %c0_54 = arith.constant 0 : index
    %149 = vector.load %arg10[%c0_53, %c0_54] : memref<8x32xf32, #tpu.memory_space<vmem>>, vector<8x32xf32>
    tpu.vector_store %arg10[%c0_53, %c0_54], %148 {strides = array<i32>} : memref<8x32xf32, #tpu.memory_space<vmem>>, vector<8x32xf32>,
    %c4_i32 = arith.constant 4 : i32
    %c0_55 = arith.constant 0 : index
    %c0_56 = arith.constant 0 : index
    %150 = vector.load %arg10[%c0_55, %c0_56] : memref<8x32xf32, #tpu.memory_space<vmem>>, vector<8x32xf32>
    %cst_57 = arith.constant dense<0.000000e+00> : vector<8x96xf32>
    %151 = tpu.matmul %150, %12, %cst_57 {dimension_numbers = #tpu.dot_dimension_numbers<[1], [0], [0], [1], [0, 0, 1, 1], [], []>} : vector<8x32xf32>, vector<32x96xf32>, vector<8x96xf32> -> vector<8x96xf32>
    %152 = arith.index_cast %c4_i32 : i32 to index
    %c0_58 = arith.constant 0 : index
    %c0_59 = arith.constant 0 : index
    %153 = vector.load %arg11[%152, %c0_58, %c0_59] : memref<8x8x96xf32, #tpu.memory_space<vmem>>, vector<1x8x96xf32>
    %154 = vector.shape_cast %153 : vector<1x8x96xf32> to vector<8x96xf32>
    %155 = vector.extract_strided_slice %154 {offsets = [0, 0], sizes = [8, 32], strides = [1, 1]} : vector<8x96xf32> to vector<8x32xf32>
    %156 = vector.extract_strided_slice %151 {offsets = [0, 0], sizes = [8, 32], strides = [1, 1]} : vector<8x96xf32> to vector<8x32xf32>
    %157 = arith.addf %155, %156 : vector<8x32xf32>
    %158 = arith.negf %157 : vector<8x32xf32>
    %159 = math.exp %158 : vector<8x32xf32>
    %cst_60 = arith.constant 1.000000e+00 : f32
    %160 = vector.broadcast %cst_60 : f32 to vector<8x32xf32>
    %161 = arith.addf %160, %159 : vector<8x32xf32>
    %162 = arith.divf %160, %161 : vector<8x32xf32>
    %163 = vector.extract_strided_slice %154 {offsets = [0, 32], sizes = [8, 32], strides = [1, 1]} : vector<8x96xf32> to vector<8x32xf32>
    %164 = vector.extract_strided_slice %151 {offsets = [0, 32], sizes = [8, 32], strides = [1, 1]} : vector<8x96xf32> to vector<8x32xf32>
    %165 = arith.addf %163, %164 : vector<8x32xf32>
    %166 = arith.negf %165 : vector<8x32xf32>
    %167 = math.exp %166 : vector<8x32xf32>
    %cst_61 = arith.constant 1.000000e+00 : f32
    %168 = vector.broadcast %cst_61 : f32 to vector<8x32xf32>
    %169 = arith.addf %168, %167 : vector<8x32xf32>
    %170 = arith.divf %168, %169 : vector<8x32xf32>
    %171 = vector.extract_strided_slice %154 {offsets = [0, 64], sizes = [8, 32], strides = [1, 1]} : vector<8x96xf32> to vector<8x32xf32>
    %172 = vector.extract_strided_slice %151 {offsets = [0, 64], sizes = [8, 32], strides = [1, 1]} : vector<8x96xf32> to vector<8x32xf32>
    %173 = vector.broadcast %13 : vector<1x32xf32> to vector<8x32xf32>
    %174 = arith.addf %172, %173 : vector<8x32xf32>
    %175 = arith.mulf %162, %174 : vector<8x32xf32>
    %176 = arith.addf %171, %175 : vector<8x32xf32>
    %177 = math.tanh %176 : vector<8x32xf32>
    %cst_62 = arith.constant 1.000000e+00 : f32
    %178 = vector.broadcast %cst_62 : f32 to vector<8x32xf32>
    %179 = arith.subf %178, %170 : vector<8x32xf32>
    %180 = arith.mulf %179, %177 : vector<8x32xf32>
    %181 = arith.mulf %170, %150 : vector<8x32xf32>
    %182 = arith.addf %180, %181 : vector<8x32xf32>
    %c0_63 = arith.constant 0 : index
    %c0_64 = arith.constant 0 : index
    %183 = vector.load %arg10[%c0_63, %c0_64] : memref<8x32xf32, #tpu.memory_space<vmem>>, vector<8x32xf32>
    tpu.vector_store %arg10[%c0_63, %c0_64], %182 {strides = array<i32>} : memref<8x32xf32, #tpu.memory_space<vmem>>, vector<8x32xf32>,
    %c5_i32 = arith.constant 5 : i32
    %c0_65 = arith.constant 0 : index
    %c0_66 = arith.constant 0 : index
    %184 = vector.load %arg10[%c0_65, %c0_66] : memref<8x32xf32, #tpu.memory_space<vmem>>, vector<8x32xf32>
    %cst_67 = arith.constant dense<0.000000e+00> : vector<8x96xf32>
    %185 = tpu.matmul %184, %12, %cst_67 {dimension_numbers = #tpu.dot_dimension_numbers<[1], [0], [0], [1], [0, 0, 1, 1], [], []>} : vector<8x32xf32>, vector<32x96xf32>, vector<8x96xf32> -> vector<8x96xf32>
    %186 = arith.index_cast %c5_i32 : i32 to index
    %c0_68 = arith.constant 0 : index
    %c0_69 = arith.constant 0 : index
    %187 = vector.load %arg11[%186, %c0_68, %c0_69] : memref<8x8x96xf32, #tpu.memory_space<vmem>>, vector<1x8x96xf32>
    %188 = vector.shape_cast %187 : vector<1x8x96xf32> to vector<8x96xf32>
    %189 = vector.extract_strided_slice %188 {offsets = [0, 0], sizes = [8, 32], strides = [1, 1]} : vector<8x96xf32> to vector<8x32xf32>
    %190 = vector.extract_strided_slice %185 {offsets = [0, 0], sizes = [8, 32], strides = [1, 1]} : vector<8x96xf32> to vector<8x32xf32>
    %191 = arith.addf %189, %190 : vector<8x32xf32>
    %192 = arith.negf %191 : vector<8x32xf32>
    %193 = math.exp %192 : vector<8x32xf32>
    %cst_70 = arith.constant 1.000000e+00 : f32
    %194 = vector.broadcast %cst_70 : f32 to vector<8x32xf32>
    %195 = arith.addf %194, %193 : vector<8x32xf32>
    %196 = arith.divf %194, %195 : vector<8x32xf32>
    %197 = vector.extract_strided_slice %188 {offsets = [0, 32], sizes = [8, 32], strides = [1, 1]} : vector<8x96xf32> to vector<8x32xf32>
    %198 = vector.extract_strided_slice %185 {offsets = [0, 32], sizes = [8, 32], strides = [1, 1]} : vector<8x96xf32> to vector<8x32xf32>
    %199 = arith.addf %197, %198 : vector<8x32xf32>
    %200 = arith.negf %199 : vector<8x32xf32>
    %201 = math.exp %200 : vector<8x32xf32>
    %cst_71 = arith.constant 1.000000e+00 : f32
    %202 = vector.broadcast %cst_71 : f32 to vector<8x32xf32>
    %203 = arith.addf %202, %201 : vector<8x32xf32>
    %204 = arith.divf %202, %203 : vector<8x32xf32>
    %205 = vector.extract_strided_slice %188 {offsets = [0, 64], sizes = [8, 32], strides = [1, 1]} : vector<8x96xf32> to vector<8x32xf32>
    %206 = vector.extract_strided_slice %185 {offsets = [0, 64], sizes = [8, 32], strides = [1, 1]} : vector<8x96xf32> to vector<8x32xf32>
    %207 = vector.broadcast %13 : vector<1x32xf32> to vector<8x32xf32>
    %208 = arith.addf %206, %207 : vector<8x32xf32>
    %209 = arith.mulf %196, %208 : vector<8x32xf32>
    %210 = arith.addf %205, %209 : vector<8x32xf32>
    %211 = math.tanh %210 : vector<8x32xf32>
    %cst_72 = arith.constant 1.000000e+00 : f32
    %212 = vector.broadcast %cst_72 : f32 to vector<8x32xf32>
    %213 = arith.subf %212, %204 : vector<8x32xf32>
    %214 = arith.mulf %213, %211 : vector<8x32xf32>
    %215 = arith.mulf %204, %184 : vector<8x32xf32>
    %216 = arith.addf %214, %215 : vector<8x32xf32>
    %c0_73 = arith.constant 0 : index
    %c0_74 = arith.constant 0 : index
    %217 = vector.load %arg10[%c0_73, %c0_74] : memref<8x32xf32, #tpu.memory_space<vmem>>, vector<8x32xf32>
    tpu.vector_store %arg10[%c0_73, %c0_74], %216 {strides = array<i32>} : memref<8x32xf32, #tpu.memory_space<vmem>>, vector<8x32xf32>,
    %c6_i32 = arith.constant 6 : i32
    %c0_75 = arith.constant 0 : index
    %c0_76 = arith.constant 0 : index
    %218 = vector.load %arg10[%c0_75, %c0_76] : memref<8x32xf32, #tpu.memory_space<vmem>>, vector<8x32xf32>
    %cst_77 = arith.constant dense<0.000000e+00> : vector<8x96xf32>
    %219 = tpu.matmul %218, %12, %cst_77 {dimension_numbers = #tpu.dot_dimension_numbers<[1], [0], [0], [1], [0, 0, 1, 1], [], []>} : vector<8x32xf32>, vector<32x96xf32>, vector<8x96xf32> -> vector<8x96xf32>
    %220 = arith.index_cast %c6_i32 : i32 to index
    %c0_78 = arith.constant 0 : index
    %c0_79 = arith.constant 0 : index
    %221 = vector.load %arg11[%220, %c0_78, %c0_79] : memref<8x8x96xf32, #tpu.memory_space<vmem>>, vector<1x8x96xf32>
    %222 = vector.shape_cast %221 : vector<1x8x96xf32> to vector<8x96xf32>
    %223 = vector.extract_strided_slice %222 {offsets = [0, 0], sizes = [8, 32], strides = [1, 1]} : vector<8x96xf32> to vector<8x32xf32>
    %224 = vector.extract_strided_slice %219 {offsets = [0, 0], sizes = [8, 32], strides = [1, 1]} : vector<8x96xf32> to vector<8x32xf32>
    %225 = arith.addf %223, %224 : vector<8x32xf32>
    %226 = arith.negf %225 : vector<8x32xf32>
    %227 = math.exp %226 : vector<8x32xf32>
    %cst_80 = arith.constant 1.000000e+00 : f32
    %228 = vector.broadcast %cst_80 : f32 to vector<8x32xf32>
    %229 = arith.addf %228, %227 : vector<8x32xf32>
    %230 = arith.divf %228, %229 : vector<8x32xf32>
    %231 = vector.extract_strided_slice %222 {offsets = [0, 32], sizes = [8, 32], strides = [1, 1]} : vector<8x96xf32> to vector<8x32xf32>
    %232 = vector.extract_strided_slice %219 {offsets = [0, 32], sizes = [8, 32], strides = [1, 1]} : vector<8x96xf32> to vector<8x32xf32>
    %233 = arith.addf %231, %232 : vector<8x32xf32>
    %234 = arith.negf %233 : vector<8x32xf32>
    %235 = math.exp %234 : vector<8x32xf32>
    %cst_81 = arith.constant 1.000000e+00 : f32
    %236 = vector.broadcast %cst_81 : f32 to vector<8x32xf32>
    %237 = arith.addf %236, %235 : vector<8x32xf32>
    %238 = arith.divf %236, %237 : vector<8x32xf32>
    %239 = vector.extract_strided_slice %222 {offsets = [0, 64], sizes = [8, 32], strides = [1, 1]} : vector<8x96xf32> to vector<8x32xf32>
    %240 = vector.extract_strided_slice %219 {offsets = [0, 64], sizes = [8, 32], strides = [1, 1]} : vector<8x96xf32> to vector<8x32xf32>
    %241 = vector.broadcast %13 : vector<1x32xf32> to vector<8x32xf32>
    %242 = arith.addf %240, %241 : vector<8x32xf32>
    %243 = arith.mulf %230, %242 : vector<8x32xf32>
    %244 = arith.addf %239, %243 : vector<8x32xf32>
    %245 = math.tanh %244 : vector<8x32xf32>
    %cst_82 = arith.constant 1.000000e+00 : f32
    %246 = vector.broadcast %cst_82 : f32 to vector<8x32xf32>
    %247 = arith.subf %246, %238 : vector<8x32xf32>
    %248 = arith.mulf %247, %245 : vector<8x32xf32>
    %249 = arith.mulf %238, %218 : vector<8x32xf32>
    %250 = arith.addf %248, %249 : vector<8x32xf32>
    %c0_83 = arith.constant 0 : index
    %c0_84 = arith.constant 0 : index
    %251 = vector.load %arg10[%c0_83, %c0_84] : memref<8x32xf32, #tpu.memory_space<vmem>>, vector<8x32xf32>
    tpu.vector_store %arg10[%c0_83, %c0_84], %250 {strides = array<i32>} : memref<8x32xf32, #tpu.memory_space<vmem>>, vector<8x32xf32>,
    %c7_i32 = arith.constant 7 : i32
    %c0_85 = arith.constant 0 : index
    %c0_86 = arith.constant 0 : index
    %252 = vector.load %arg10[%c0_85, %c0_86] : memref<8x32xf32, #tpu.memory_space<vmem>>, vector<8x32xf32>
    %cst_87 = arith.constant dense<0.000000e+00> : vector<8x96xf32>
    %253 = tpu.matmul %252, %12, %cst_87 {dimension_numbers = #tpu.dot_dimension_numbers<[1], [0], [0], [1], [0, 0, 1, 1], [], []>} : vector<8x32xf32>, vector<32x96xf32>, vector<8x96xf32> -> vector<8x96xf32>
    %254 = arith.index_cast %c7_i32 : i32 to index
    %c0_88 = arith.constant 0 : index
    %c0_89 = arith.constant 0 : index
    %255 = vector.load %arg11[%254, %c0_88, %c0_89] : memref<8x8x96xf32, #tpu.memory_space<vmem>>, vector<1x8x96xf32>
    %256 = vector.shape_cast %255 : vector<1x8x96xf32> to vector<8x96xf32>
    %257 = vector.extract_strided_slice %256 {offsets = [0, 0], sizes = [8, 32], strides = [1, 1]} : vector<8x96xf32> to vector<8x32xf32>
    %258 = vector.extract_strided_slice %253 {offsets = [0, 0], sizes = [8, 32], strides = [1, 1]} : vector<8x96xf32> to vector<8x32xf32>
    %259 = arith.addf %257, %258 : vector<8x32xf32>
    %260 = arith.negf %259 : vector<8x32xf32>
    %261 = math.exp %260 : vector<8x32xf32>
    %cst_90 = arith.constant 1.000000e+00 : f32
    %262 = vector.broadcast %cst_90 : f32 to vector<8x32xf32>
    %263 = arith.addf %262, %261 : vector<8x32xf32>
    %264 = arith.divf %262, %263 : vector<8x32xf32>
    %265 = vector.extract_strided_slice %256 {offsets = [0, 32], sizes = [8, 32], strides = [1, 1]} : vector<8x96xf32> to vector<8x32xf32>
    %266 = vector.extract_strided_slice %253 {offsets = [0, 32], sizes = [8, 32], strides = [1, 1]} : vector<8x96xf32> to vector<8x32xf32>
    %267 = arith.addf %265, %266 : vector<8x32xf32>
    %268 = arith.negf %267 : vector<8x32xf32>
    %269 = math.exp %268 : vector<8x32xf32>
    %cst_91 = arith.constant 1.000000e+00 : f32
    %270 = vector.broadcast %cst_91 : f32 to vector<8x32xf32>
    %271 = arith.addf %270, %269 : vector<8x32xf32>
    %272 = arith.divf %270, %271 : vector<8x32xf32>
    %273 = vector.extract_strided_slice %256 {offsets = [0, 64], sizes = [8, 32], strides = [1, 1]} : vector<8x96xf32> to vector<8x32xf32>
    %274 = vector.extract_strided_slice %253 {offsets = [0, 64], sizes = [8, 32], strides = [1, 1]} : vector<8x96xf32> to vector<8x32xf32>
    %275 = vector.broadcast %13 : vector<1x32xf32> to vector<8x32xf32>
    %276 = arith.addf %274, %275 : vector<8x32xf32>
    %277 = arith.mulf %264, %276 : vector<8x32xf32>
    %278 = arith.addf %273, %277 : vector<8x32xf32>
    %279 = math.tanh %278 : vector<8x32xf32>
    %cst_92 = arith.constant 1.000000e+00 : f32
    %280 = vector.broadcast %cst_92 : f32 to vector<8x32xf32>
    %281 = arith.subf %280, %272 : vector<8x32xf32>
    %282 = arith.mulf %281, %279 : vector<8x32xf32>
    %283 = arith.mulf %272, %252 : vector<8x32xf32>
    %284 = arith.addf %282, %283 : vector<8x32xf32>
    %c0_93 = arith.constant 0 : index
    %c0_94 = arith.constant 0 : index
    %285 = vector.load %arg10[%c0_93, %c0_94] : memref<8x32xf32, #tpu.memory_space<vmem>>, vector<8x32xf32>
    tpu.vector_store %arg10[%c0_93, %c0_94], %284 {strides = array<i32>} : memref<8x32xf32, #tpu.memory_space<vmem>>, vector<8x32xf32>,
    %c8_i32 = arith.constant 8 : i32
    %c0_i32_95 = arith.constant 0 : i32
    %286 = arith.cmpi eq, %arg1, %c0_i32_95 : i32
    %287 = arith.extui %286 : i1 to i32
    %c0_i32_96 = arith.constant 0 : i32
    %288 = arith.cmpi ne, %287, %c0_i32_96 : i32
    scf.if %288 {
      %c0_97 = arith.constant 0 : index
      %c0_98 = arith.constant 0 : index
      %289 = vector.load %arg10[%c0_97, %c0_98] : memref<8x32xf32, #tpu.memory_space<vmem>>, vector<8x32xf32>
      %c0_99 = arith.constant 0 : index
      %c0_100 = arith.constant 0 : index
      %290 = vector.load %arg7[%c0_99, %c0_100] : memref<32x16xf32, #tpu.memory_space<vmem>>, vector<32x16xf32>
      %cst_101 = arith.constant dense<0.000000e+00> : vector<8x16xf32>
      %291 = tpu.matmul %289, %290, %cst_101 {dimension_numbers = #tpu.dot_dimension_numbers<[1], [0], [0], [1], [0, 0, 1, 1], [], []>} : vector<8x32xf32>, vector<32x16xf32>, vector<8x16xf32> -> vector<8x16xf32>
      %c0_102 = arith.constant 0 : index
      %c0_103 = arith.constant 0 : index
      %292 = vector.load %arg8[%c0_102, %c0_103] : memref<1x16xf32, #tpu.memory_space<vmem>>, vector<1x16xf32>
      %293 = vector.broadcast %292 : vector<1x16xf32> to vector<8x16xf32>
      %294 = arith.addf %291, %293 : vector<8x16xf32>
      %c0_104 = arith.constant 0 : index
      %c0_105 = arith.constant 0 : index
      %295 = vector.load %arg9[%c0_104, %c0_105] : memref<8x16xf32, #tpu.memory_space<vmem>>, vector<8x16xf32>
      tpu.vector_store %arg9[%c0_104, %c0_105], %294 {strides = array<i32>} : memref<8x16xf32, #tpu.memory_space<vmem>>, vector<8x16xf32>,
    } else {
    }
    return
  }
  func.func @transform_0(%arg0: i32, %arg1: i32) -> (i32, i32, i32) {
    %c0_i32 = arith.constant 0 : i32
    %c0_i32_0 = arith.constant 0 : i32
    return %arg1, %arg0, %c0_i32 : i32, i32, i32
  }
  func.func @transform_1(%arg0: i32, %arg1: i32) -> (i32, i32) {
    %c0_i32 = arith.constant 0 : i32
    %c0_i32_0 = arith.constant 0 : i32
    %c0_i32_1 = arith.constant 0 : i32
    return %c0_i32, %c0_i32_0 : i32, i32
  }
  func.func @transform_2(%arg0: i32, %arg1: i32) -> (i32, i32) {
    %c0_i32 = arith.constant 0 : i32
    %c0_i32_0 = arith.constant 0 : i32
    %c0_i32_1 = arith.constant 0 : i32
    return %c0_i32, %c0_i32_0 : i32, i32
  }
  func.func @transform_3(%arg0: i32, %arg1: i32) -> (i32, i32) {
    %c0_i32 = arith.constant 0 : i32
    %c0_i32_0 = arith.constant 0 : i32
    %c0_i32_1 = arith.constant 0 : i32
    return %c0_i32, %c0_i32_0 : i32, i32
  }
  func.func @transform_4(%arg0: i32, %arg1: i32) -> (i32, i32) {
    %c0_i32 = arith.constant 0 : i32
    %c0_i32_0 = arith.constant 0 : i32
    %c0_i32_1 = arith.constant 0 : i32
    return %c0_i32, %c0_i32_0 : i32, i32
  }
  func.func @transform_5(%arg0: i32, %arg1: i32) -> (i32, i32) {
    %c0_i32 = arith.constant 0 : i32
    %c0_i32_0 = arith.constant 0 : i32
    %c0_i32_1 = arith.constant 0 : i32
    return %c0_i32, %c0_i32_0 : i32, i32
  }
  func.func @transform_6(%arg0: i32, %arg1: i32) -> (i32, i32) {
    %c0_i32 = arith.constant 0 : i32
    %c0_i32_0 = arith.constant 0 : i32
    %c0_i32_1 = arith.constant 0 : i32
    return %c0_i32, %c0_i32_0 : i32, i32
  }
  func.func @transform_7(%arg0: i32, %arg1: i32) -> (i32, i32) {
    %c0_i32 = arith.constant 0 : i32
    %c0_i32_0 = arith.constant 0 : i32
    return %arg0, %c0_i32 : i32, i32
  }
}

module attributes {stable_mosaic.version = 11 : i64} {
  func.func @_gru_encoder_kernel(%arg0: i32, %arg1: i32, %arg2: memref<8x8x16xf32, #tpu.memory_space<vmem>>, %arg3: memref<16x96xf32, #tpu.memory_space<vmem>>, %arg4: memref<32x96xf32, #tpu.memory_space<vmem>>, %arg5: memref<1x96xf32, #tpu.memory_space<vmem>>, %arg6: memref<1x32xf32, #tpu.memory_space<vmem>>, %arg7: memref<32x16xf32, #tpu.memory_space<vmem>>, %arg8: memref<1x16xf32, #tpu.memory_space<vmem>>, %arg9: memref<8x16xf32, #tpu.memory_space<vmem>>, %arg10: memref<8x32xf32, #tpu.memory_space<vmem>>, %arg11: memref<8x8x96xf32, #tpu.memory_space<vmem>>) attributes {dimension_semantics = [#tpu.dimension_semantics<parallel>, #tpu.dimension_semantics<arbitrary>], iteration_bounds = array<i64: 1, 1>, scalar_prefetch = 0 : i64, scratch_operands = 2 : i64, tpu.core_type = #tpu.core_type<tc>, window_params = [{transform_indices = @transform_0, window_bounds = array<i64: 8, 8, 16>}, {pipeline_mode = #tpu.pipeline_mode<synchronous>, transform_indices = @transform_1, window_bounds = array<i64: 16, 96>}, {pipeline_mode = #tpu.pipeline_mode<synchronous>, transform_indices = @transform_2, window_bounds = array<i64: 32, 96>}, {pipeline_mode = #tpu.pipeline_mode<synchronous>, transform_indices = @transform_3, window_bounds = array<i64: 1, 96>}, {pipeline_mode = #tpu.pipeline_mode<synchronous>, transform_indices = @transform_4, window_bounds = array<i64: 1, 32>}, {pipeline_mode = #tpu.pipeline_mode<synchronous>, transform_indices = @transform_5, window_bounds = array<i64: 32, 16>}, {pipeline_mode = #tpu.pipeline_mode<synchronous>, transform_indices = @transform_6, window_bounds = array<i64: 1, 16>}, {transform_indices = @transform_7, window_bounds = array<i64: 8, 16>}]} {
    %c0_i32 = arith.constant 0 : i32
    %0 = arith.cmpi eq, %arg1, %c0_i32 : i32
    %1 = arith.extui %0 : i1 to i32
    %c0_i32_0 = arith.constant 0 : i32
    %2 = arith.cmpi ne, %1, %c0_i32_0 : i32
    scf.if %2 {
      %cst_97 = arith.constant 0.000000e+00 : f32
      %289 = vector.broadcast %cst_97 : f32 to vector<8x32xf32>
      %c0_98 = arith.constant 0 : index
      %c0_99 = arith.constant 0 : index
      %290 = vector.load %arg10[%c0_98, %c0_99] : memref<8x32xf32, #tpu.memory_space<vmem>>, vector<8x32xf32>
      tpu.vector_store %arg10[%c0_98, %c0_99], %289 {strides = array<i32>} : memref<8x32xf32, #tpu.memory_space<vmem>>, vector<8x32xf32>,
    } else {
    }
    %c0 = arith.constant 0 : index
    %c0_1 = arith.constant 0 : index
    %c0_2 = arith.constant 0 : index
    %3 = vector.load %arg2[%c0, %c0_1, %c0_2] : memref<8x8x16xf32, #tpu.memory_space<vmem>>, vector<8x8x16xf32>
    %4 = vector.shape_cast %3 : vector<8x8x16xf32> to vector<64x16xf32>
    %c0_3 = arith.constant 0 : index
    %c0_4 = arith.constant 0 : index
    %5 = vector.load %arg3[%c0_3, %c0_4] : memref<16x96xf32, #tpu.memory_space<vmem>>, vector<16x96xf32>
    %cst = arith.constant dense<0.000000e+00> : vector<64x96xf32>
    %6 = tpu.matmul %4, %5, %cst {dimension_numbers = #tpu.dot_dimension_numbers<[1], [0], [0], [1], [0, 0, 1, 1], [], []>} : vector<64x16xf32>, vector<16x96xf32>, vector<64x96xf32> -> vector<64x96xf32>
    %c0_5 = arith.constant 0 : index
    %c0_6 = arith.constant 0 : index
    %7 = vector.load %arg5[%c0_5, %c0_6] : memref<1x96xf32, #tpu.memory_space<vmem>>, vector<1x96xf32>
    %8 = vector.broadcast %7 : vector<1x96xf32> to vector<64x96xf32>
    %9 = arith.addf %6, %8 : vector<64x96xf32>
    %10 = vector.shape_cast %9 : vector<64x96xf32> to vector<8x8x96xf32>
    %c0_7 = arith.constant 0 : index
    %c0_8 = arith.constant 0 : index
    %c0_9 = arith.constant 0 : index
    %11 = vector.load %arg11[%c0_7, %c0_8, %c0_9] : memref<8x8x96xf32, #tpu.memory_space<vmem>>, vector<8x8x96xf32>
    tpu.vector_store %arg11[%c0_7, %c0_8, %c0_9], %10 {strides = array<i32>} : memref<8x8x96xf32, #tpu.memory_space<vmem>>, vector<8x8x96xf32>,
    %c0_10 = arith.constant 0 : index
    %c0_11 = arith.constant 0 : index
    %12 = vector.load %arg4[%c0_10, %c0_11] : memref<32x96xf32, #tpu.memory_space<vmem>>, vector<32x96xf32>
    %c0_12 = arith.constant 0 : index
    %c0_13 = arith.constant 0 : index
    %13 = vector.load %arg6[%c0_12, %c0_13] : memref<1x32xf32, #tpu.memory_space<vmem>>, vector<1x32xf32>
    %c0_i32_14 = arith.constant 0 : i32
    %c0_15 = arith.constant 0 : index
    %c0_16 = arith.constant 0 : index
    %14 = vector.load %arg10[%c0_15, %c0_16] : memref<8x32xf32, #tpu.memory_space<vmem>>, vector<8x32xf32>
    %cst_17 = arith.constant dense<0.000000e+00> : vector<8x96xf32>
    %15 = tpu.matmul %14, %12, %cst_17 {dimension_numbers = #tpu.dot_dimension_numbers<[1], [0], [0], [1], [0, 0, 1, 1], [], []>} : vector<8x32xf32>, vector<32x96xf32>, vector<8x96xf32> -> vector<8x96xf32>
    %16 = arith.index_cast %c0_i32_14 : i32 to index
    %c0_18 = arith.constant 0 : index
    %c0_19 = arith.constant 0 : index
    %17 = vector.load %arg11[%16, %c0_18, %c0_19] : memref<8x8x96xf32, #tpu.memory_space<vmem>>, vector<1x8x96xf32>
    %18 = vector.shape_cast %17 : vector<1x8x96xf32> to vector<8x96xf32>
    %19 = vector.extract_strided_slice %18 {offsets = [0, 0], sizes = [8, 32], strides = [1, 1]} : vector<8x96xf32> to vector<8x32xf32>
    %20 = vector.extract_strided_slice %15 {offsets = [0, 0], sizes = [8, 32], strides = [1, 1]} : vector<8x96xf32> to vector<8x32xf32>
    %21 = arith.addf %19, %20 : vector<8x32xf32>
    %22 = arith.negf %21 : vector<8x32xf32>
    %23 = math.exp %22 : vector<8x32xf32>
    %cst_20 = arith.constant 1.000000e+00 : f32
    %24 = vector.broadcast %cst_20 : f32 to vector<8x32xf32>
    %25 = arith.addf %24, %23 : vector<8x32xf32>
    %26 = arith.divf %24, %25 : vector<8x32xf32>
    %27 = vector.extract_strided_slice %18 {offsets = [0, 32], sizes = [8, 32], strides = [1, 1]} : vector<8x96xf32> to vector<8x32xf32>
    %28 = vector.extract_strided_slice %15 {offsets = [0, 32], sizes = [8, 32], strides = [1, 1]} : vector<8x96xf32> to vector<8x32xf32>
    %29 = arith.addf %27, %28 : vector<8x32xf32>
    %30 = arith.negf %29 : vector<8x32xf32>
    %31 = math.exp %30 : vector<8x32xf32>
    %cst_21 = arith.constant 1.000000e+00 : f32
    %32 = vector.broadcast %cst_21 : f32 to vector<8x32xf32>
    %33 = arith.addf %32, %31 : vector<8x32xf32>
    %34 = arith.divf %32, %33 : vector<8x32xf32>
    %35 = vector.extract_strided_slice %18 {offsets = [0, 64], sizes = [8, 32], strides = [1, 1]} : vector<8x96xf32> to vector<8x32xf32>
    %36 = vector.extract_strided_slice %15 {offsets = [0, 64], sizes = [8, 32], strides = [1, 1]} : vector<8x96xf32> to vector<8x32xf32>
    %37 = vector.broadcast %13 : vector<1x32xf32> to vector<8x32xf32>
    %38 = arith.addf %36, %37 : vector<8x32xf32>
    %39 = arith.mulf %26, %38 : vector<8x32xf32>
    %40 = arith.addf %35, %39 : vector<8x32xf32>
    %41 = math.tanh %40 : vector<8x32xf32>
    %cst_22 = arith.constant 1.000000e+00 : f32
    %42 = vector.broadcast %cst_22 : f32 to vector<8x32xf32>
    %43 = arith.subf %42, %34 : vector<8x32xf32>
    %44 = arith.mulf %43, %41 : vector<8x32xf32>
    %45 = arith.mulf %34, %14 : vector<8x32xf32>
    %46 = arith.addf %44, %45 : vector<8x32xf32>
    %c0_23 = arith.constant 0 : index
    %c0_24 = arith.constant 0 : index
    %47 = vector.load %arg10[%c0_23, %c0_24] : memref<8x32xf32, #tpu.memory_space<vmem>>, vector<8x32xf32>
    tpu.vector_store %arg10[%c0_23, %c0_24], %46 {strides = array<i32>} : memref<8x32xf32, #tpu.memory_space<vmem>>, vector<8x32xf32>,
    %c1_i32 = arith.constant 1 : i32
    %c0_25 = arith.constant 0 : index
    %c0_26 = arith.constant 0 : index
    %48 = vector.load %arg10[%c0_25, %c0_26] : memref<8x32xf32, #tpu.memory_space<vmem>>, vector<8x32xf32>
    %cst_27 = arith.constant dense<0.000000e+00> : vector<8x96xf32>
    %49 = tpu.matmul %48, %12, %cst_27 {dimension_numbers = #tpu.dot_dimension_numbers<[1], [0], [0], [1], [0, 0, 1, 1], [], []>} : vector<8x32xf32>, vector<32x96xf32>, vector<8x96xf32> -> vector<8x96xf32>
    %50 = arith.index_cast %c1_i32 : i32 to index
    %c0_28 = arith.constant 0 : index
    %c0_29 = arith.constant 0 : index
    %51 = vector.load %arg11[%50, %c0_28, %c0_29] : memref<8x8x96xf32, #tpu.memory_space<vmem>>, vector<1x8x96xf32>
    %52 = vector.shape_cast %51 : vector<1x8x96xf32> to vector<8x96xf32>
    %53 = vector.extract_strided_slice %52 {offsets = [0, 0], sizes = [8, 32], strides = [1, 1]} : vector<8x96xf32> to vector<8x32xf32>
    %54 = vector.extract_strided_slice %49 {offsets = [0, 0], sizes = [8, 32], strides = [1, 1]} : vector<8x96xf32> to vector<8x32xf32>
    %55 = arith.addf %53, %54 : vector<8x32xf32>
    %56 = arith.negf %55 : vector<8x32xf32>
    %57 = math.exp %56 : vector<8x32xf32>
    %cst_30 = arith.constant 1.000000e+00 : f32
    %58 = vector.broadcast %cst_30 : f32 to vector<8x32xf32>
    %59 = arith.addf %58, %57 : vector<8x32xf32>
    %60 = arith.divf %58, %59 : vector<8x32xf32>
    %61 = vector.extract_strided_slice %52 {offsets = [0, 32], sizes = [8, 32], strides = [1, 1]} : vector<8x96xf32> to vector<8x32xf32>
    %62 = vector.extract_strided_slice %49 {offsets = [0, 32], sizes = [8, 32], strides = [1, 1]} : vector<8x96xf32> to vector<8x32xf32>
    %63 = arith.addf %61, %62 : vector<8x32xf32>
    %64 = arith.negf %63 : vector<8x32xf32>
    %65 = math.exp %64 : vector<8x32xf32>
    %cst_31 = arith.constant 1.000000e+00 : f32
    %66 = vector.broadcast %cst_31 : f32 to vector<8x32xf32>
    %67 = arith.addf %66, %65 : vector<8x32xf32>
    %68 = arith.divf %66, %67 : vector<8x32xf32>
    %69 = vector.extract_strided_slice %52 {offsets = [0, 64], sizes = [8, 32], strides = [1, 1]} : vector<8x96xf32> to vector<8x32xf32>
    %70 = vector.extract_strided_slice %49 {offsets = [0, 64], sizes = [8, 32], strides = [1, 1]} : vector<8x96xf32> to vector<8x32xf32>
    %71 = vector.broadcast %13 : vector<1x32xf32> to vector<8x32xf32>
    %72 = arith.addf %70, %71 : vector<8x32xf32>
    %73 = arith.mulf %60, %72 : vector<8x32xf32>
    %74 = arith.addf %69, %73 : vector<8x32xf32>
    %75 = math.tanh %74 : vector<8x32xf32>
    %cst_32 = arith.constant 1.000000e+00 : f32
    %76 = vector.broadcast %cst_32 : f32 to vector<8x32xf32>
    %77 = arith.subf %76, %68 : vector<8x32xf32>
    %78 = arith.mulf %77, %75 : vector<8x32xf32>
    %79 = arith.mulf %68, %48 : vector<8x32xf32>
    %80 = arith.addf %78, %79 : vector<8x32xf32>
    %c0_33 = arith.constant 0 : index
    %c0_34 = arith.constant 0 : index
    %81 = vector.load %arg10[%c0_33, %c0_34] : memref<8x32xf32, #tpu.memory_space<vmem>>, vector<8x32xf32>
    tpu.vector_store %arg10[%c0_33, %c0_34], %80 {strides = array<i32>} : memref<8x32xf32, #tpu.memory_space<vmem>>, vector<8x32xf32>,
    %c2_i32 = arith.constant 2 : i32
    %c0_35 = arith.constant 0 : index
    %c0_36 = arith.constant 0 : index
    %82 = vector.load %arg10[%c0_35, %c0_36] : memref<8x32xf32, #tpu.memory_space<vmem>>, vector<8x32xf32>
    %cst_37 = arith.constant dense<0.000000e+00> : vector<8x96xf32>
    %83 = tpu.matmul %82, %12, %cst_37 {dimension_numbers = #tpu.dot_dimension_numbers<[1], [0], [0], [1], [0, 0, 1, 1], [], []>} : vector<8x32xf32>, vector<32x96xf32>, vector<8x96xf32> -> vector<8x96xf32>
    %84 = arith.index_cast %c2_i32 : i32 to index
    %c0_38 = arith.constant 0 : index
    %c0_39 = arith.constant 0 : index
    %85 = vector.load %arg11[%84, %c0_38, %c0_39] : memref<8x8x96xf32, #tpu.memory_space<vmem>>, vector<1x8x96xf32>
    %86 = vector.shape_cast %85 : vector<1x8x96xf32> to vector<8x96xf32>
    %87 = vector.extract_strided_slice %86 {offsets = [0, 0], sizes = [8, 32], strides = [1, 1]} : vector<8x96xf32> to vector<8x32xf32>
    %88 = vector.extract_strided_slice %83 {offsets = [0, 0], sizes = [8, 32], strides = [1, 1]} : vector<8x96xf32> to vector<8x32xf32>
    %89 = arith.addf %87, %88 : vector<8x32xf32>
    %90 = arith.negf %89 : vector<8x32xf32>
    %91 = math.exp %90 : vector<8x32xf32>
    %cst_40 = arith.constant 1.000000e+00 : f32
    %92 = vector.broadcast %cst_40 : f32 to vector<8x32xf32>
    %93 = arith.addf %92, %91 : vector<8x32xf32>
    %94 = arith.divf %92, %93 : vector<8x32xf32>
    %95 = vector.extract_strided_slice %86 {offsets = [0, 32], sizes = [8, 32], strides = [1, 1]} : vector<8x96xf32> to vector<8x32xf32>
    %96 = vector.extract_strided_slice %83 {offsets = [0, 32], sizes = [8, 32], strides = [1, 1]} : vector<8x96xf32> to vector<8x32xf32>
    %97 = arith.addf %95, %96 : vector<8x32xf32>
    %98 = arith.negf %97 : vector<8x32xf32>
    %99 = math.exp %98 : vector<8x32xf32>
    %cst_41 = arith.constant 1.000000e+00 : f32
    %100 = vector.broadcast %cst_41 : f32 to vector<8x32xf32>
    %101 = arith.addf %100, %99 : vector<8x32xf32>
    %102 = arith.divf %100, %101 : vector<8x32xf32>
    %103 = vector.extract_strided_slice %86 {offsets = [0, 64], sizes = [8, 32], strides = [1, 1]} : vector<8x96xf32> to vector<8x32xf32>
    %104 = vector.extract_strided_slice %83 {offsets = [0, 64], sizes = [8, 32], strides = [1, 1]} : vector<8x96xf32> to vector<8x32xf32>
    %105 = vector.broadcast %13 : vector<1x32xf32> to vector<8x32xf32>
    %106 = arith.addf %104, %105 : vector<8x32xf32>
    %107 = arith.mulf %94, %106 : vector<8x32xf32>
    %108 = arith.addf %103, %107 : vector<8x32xf32>
    %109 = math.tanh %108 : vector<8x32xf32>
    %cst_42 = arith.constant 1.000000e+00 : f32
    %110 = vector.broadcast %cst_42 : f32 to vector<8x32xf32>
    %111 = arith.subf %110, %102 : vector<8x32xf32>
    %112 = arith.mulf %111, %109 : vector<8x32xf32>
    %113 = arith.mulf %102, %82 : vector<8x32xf32>
    %114 = arith.addf %112, %113 : vector<8x32xf32>
    %c0_43 = arith.constant 0 : index
    %c0_44 = arith.constant 0 : index
    %115 = vector.load %arg10[%c0_43, %c0_44] : memref<8x32xf32, #tpu.memory_space<vmem>>, vector<8x32xf32>
    tpu.vector_store %arg10[%c0_43, %c0_44], %114 {strides = array<i32>} : memref<8x32xf32, #tpu.memory_space<vmem>>, vector<8x32xf32>,
    %c3_i32 = arith.constant 3 : i32
    %c0_45 = arith.constant 0 : index
    %c0_46 = arith.constant 0 : index
    %116 = vector.load %arg10[%c0_45, %c0_46] : memref<8x32xf32, #tpu.memory_space<vmem>>, vector<8x32xf32>
    %cst_47 = arith.constant dense<0.000000e+00> : vector<8x96xf32>
    %117 = tpu.matmul %116, %12, %cst_47 {dimension_numbers = #tpu.dot_dimension_numbers<[1], [0], [0], [1], [0, 0, 1, 1], [], []>} : vector<8x32xf32>, vector<32x96xf32>, vector<8x96xf32> -> vector<8x96xf32>
    %118 = arith.index_cast %c3_i32 : i32 to index
    %c0_48 = arith.constant 0 : index
    %c0_49 = arith.constant 0 : index
    %119 = vector.load %arg11[%118, %c0_48, %c0_49] : memref<8x8x96xf32, #tpu.memory_space<vmem>>, vector<1x8x96xf32>
    %120 = vector.shape_cast %119 : vector<1x8x96xf32> to vector<8x96xf32>
    %121 = vector.extract_strided_slice %120 {offsets = [0, 0], sizes = [8, 32], strides = [1, 1]} : vector<8x96xf32> to vector<8x32xf32>
    %122 = vector.extract_strided_slice %117 {offsets = [0, 0], sizes = [8, 32], strides = [1, 1]} : vector<8x96xf32> to vector<8x32xf32>
    %123 = arith.addf %121, %122 : vector<8x32xf32>
    %124 = arith.negf %123 : vector<8x32xf32>
    %125 = math.exp %124 : vector<8x32xf32>
    %cst_50 = arith.constant 1.000000e+00 : f32
    %126 = vector.broadcast %cst_50 : f32 to vector<8x32xf32>
    %127 = arith.addf %126, %125 : vector<8x32xf32>
    %128 = arith.divf %126, %127 : vector<8x32xf32>
    %129 = vector.extract_strided_slice %120 {offsets = [0, 32], sizes = [8, 32], strides = [1, 1]} : vector<8x96xf32> to vector<8x32xf32>
    %130 = vector.extract_strided_slice %117 {offsets = [0, 32], sizes = [8, 32], strides = [1, 1]} : vector<8x96xf32> to vector<8x32xf32>
    %131 = arith.addf %129, %130 : vector<8x32xf32>
    %132 = arith.negf %131 : vector<8x32xf32>
    %133 = math.exp %132 : vector<8x32xf32>
    %cst_51 = arith.constant 1.000000e+00 : f32
    %134 = vector.broadcast %cst_51 : f32 to vector<8x32xf32>
    %135 = arith.addf %134, %133 : vector<8x32xf32>
    %136 = arith.divf %134, %135 : vector<8x32xf32>
    %137 = vector.extract_strided_slice %120 {offsets = [0, 64], sizes = [8, 32], strides = [1, 1]} : vector<8x96xf32> to vector<8x32xf32>
    %138 = vector.extract_strided_slice %117 {offsets = [0, 64], sizes = [8, 32], strides = [1, 1]} : vector<8x96xf32> to vector<8x32xf32>
    %139 = vector.broadcast %13 : vector<1x32xf32> to vector<8x32xf32>
    %140 = arith.addf %138, %139 : vector<8x32xf32>
    %141 = arith.mulf %128, %140 : vector<8x32xf32>
    %142 = arith.addf %137, %141 : vector<8x32xf32>
    %143 = math.tanh %142 : vector<8x32xf32>
    %cst_52 = arith.constant 1.000000e+00 : f32
    %144 = vector.broadcast %cst_52 : f32 to vector<8x32xf32>
    %145 = arith.subf %144, %136 : vector<8x32xf32>
    %146 = arith.mulf %145, %143 : vector<8x32xf32>
    %147 = arith.mulf %136, %116 : vector<8x32xf32>
    %148 = arith.addf %146, %147 : vector<8x32xf32>
    %c0_53 = arith.constant 0 : index
    %c0_54 = arith.constant 0 : index
    %149 = vector.load %arg10[%c0_53, %c0_54] : memref<8x32xf32, #tpu.memory_space<vmem>>, vector<8x32xf32>
    tpu.vector_store %arg10[%c0_53, %c0_54], %148 {strides = array<i32>} : memref<8x32xf32, #tpu.memory_space<vmem>>, vector<8x32xf32>,
    %c4_i32 = arith.constant 4 : i32
    %c0_55 = arith.constant 0 : index
    %c0_56 = arith.constant 0 : index
    %150 = vector.load %arg10[%c0_55, %c0_56] : memref<8x32xf32, #tpu.memory_space<vmem>>, vector<8x32xf32>
    %cst_57 = arith.constant dense<0.000000e+00> : vector<8x96xf32>
    %151 = tpu.matmul %150, %12, %cst_57 {dimension_numbers = #tpu.dot_dimension_numbers<[1], [0], [0], [1], [0, 0, 1, 1], [], []>} : vector<8x32xf32>, vector<32x96xf32>, vector<8x96xf32> -> vector<8x96xf32>
    %152 = arith.index_cast %c4_i32 : i32 to index
    %c0_58 = arith.constant 0 : index
    %c0_59 = arith.constant 0 : index
    %153 = vector.load %arg11[%152, %c0_58, %c0_59] : memref<8x8x96xf32, #tpu.memory_space<vmem>>, vector<1x8x96xf32>
    %154 = vector.shape_cast %153 : vector<1x8x96xf32> to vector<8x96xf32>
    %155 = vector.extract_strided_slice %154 {offsets = [0, 0], sizes = [8, 32], strides = [1, 1]} : vector<8x96xf32> to vector<8x32xf32>
    %156 = vector.extract_strided_slice %151 {offsets = [0, 0], sizes = [8, 32], strides = [1, 1]} : vector<8x96xf32> to vector<8x32xf32>
    %157 = arith.addf %155, %156 : vector<8x32xf32>
    %158 = arith.negf %157 : vector<8x32xf32>
    %159 = math.exp %158 : vector<8x32xf32>
    %cst_60 = arith.constant 1.000000e+00 : f32
    %160 = vector.broadcast %cst_60 : f32 to vector<8x32xf32>
    %161 = arith.addf %160, %159 : vector<8x32xf32>
    %162 = arith.divf %160, %161 : vector<8x32xf32>
    %163 = vector.extract_strided_slice %154 {offsets = [0, 32], sizes = [8, 32], strides = [1, 1]} : vector<8x96xf32> to vector<8x32xf32>
    %164 = vector.extract_strided_slice %151 {offsets = [0, 32], sizes = [8, 32], strides = [1, 1]} : vector<8x96xf32> to vector<8x32xf32>
    %165 = arith.addf %163, %164 : vector<8x32xf32>
    %166 = arith.negf %165 : vector<8x32xf32>
    %167 = math.exp %166 : vector<8x32xf32>
    %cst_61 = arith.constant 1.000000e+00 : f32
    %168 = vector.broadcast %cst_61 : f32 to vector<8x32xf32>
    %169 = arith.addf %168, %167 : vector<8x32xf32>
    %170 = arith.divf %168, %169 : vector<8x32xf32>
    %171 = vector.extract_strided_slice %154 {offsets = [0, 64], sizes = [8, 32], strides = [1, 1]} : vector<8x96xf32> to vector<8x32xf32>
    %172 = vector.extract_strided_slice %151 {offsets = [0, 64], sizes = [8, 32], strides = [1, 1]} : vector<8x96xf32> to vector<8x32xf32>
    %173 = vector.broadcast %13 : vector<1x32xf32> to vector<8x32xf32>
    %174 = arith.addf %172, %173 : vector<8x32xf32>
    %175 = arith.mulf %162, %174 : vector<8x32xf32>
    %176 = arith.addf %171, %175 : vector<8x32xf32>
    %177 = math.tanh %176 : vector<8x32xf32>
    %cst_62 = arith.constant 1.000000e+00 : f32
    %178 = vector.broadcast %cst_62 : f32 to vector<8x32xf32>
    %179 = arith.subf %178, %170 : vector<8x32xf32>
    %180 = arith.mulf %179, %177 : vector<8x32xf32>
    %181 = arith.mulf %170, %150 : vector<8x32xf32>
    %182 = arith.addf %180, %181 : vector<8x32xf32>
    %c0_63 = arith.constant 0 : index
    %c0_64 = arith.constant 0 : index
    %183 = vector.load %arg10[%c0_63, %c0_64] : memref<8x32xf32, #tpu.memory_space<vmem>>, vector<8x32xf32>
    tpu.vector_store %arg10[%c0_63, %c0_64], %182 {strides = array<i32>} : memref<8x32xf32, #tpu.memory_space<vmem>>, vector<8x32xf32>,
    %c5_i32 = arith.constant 5 : i32
    %c0_65 = arith.constant 0 : index
    %c0_66 = arith.constant 0 : index
    %184 = vector.load %arg10[%c0_65, %c0_66] : memref<8x32xf32, #tpu.memory_space<vmem>>, vector<8x32xf32>
    %cst_67 = arith.constant dense<0.000000e+00> : vector<8x96xf32>
    %185 = tpu.matmul %184, %12, %cst_67 {dimension_numbers = #tpu.dot_dimension_numbers<[1], [0], [0], [1], [0, 0, 1, 1], [], []>} : vector<8x32xf32>, vector<32x96xf32>, vector<8x96xf32> -> vector<8x96xf32>
    %186 = arith.index_cast %c5_i32 : i32 to index
    %c0_68 = arith.constant 0 : index
    %c0_69 = arith.constant 0 : index
    %187 = vector.load %arg11[%186, %c0_68, %c0_69] : memref<8x8x96xf32, #tpu.memory_space<vmem>>, vector<1x8x96xf32>
    %188 = vector.shape_cast %187 : vector<1x8x96xf32> to vector<8x96xf32>
    %189 = vector.extract_strided_slice %188 {offsets = [0, 0], sizes = [8, 32], strides = [1, 1]} : vector<8x96xf32> to vector<8x32xf32>
    %190 = vector.extract_strided_slice %185 {offsets = [0, 0], sizes = [8, 32], strides = [1, 1]} : vector<8x96xf32> to vector<8x32xf32>
    %191 = arith.addf %189, %190 : vector<8x32xf32>
    %192 = arith.negf %191 : vector<8x32xf32>
    %193 = math.exp %192 : vector<8x32xf32>
    %cst_70 = arith.constant 1.000000e+00 : f32
    %194 = vector.broadcast %cst_70 : f32 to vector<8x32xf32>
    %195 = arith.addf %194, %193 : vector<8x32xf32>
    %196 = arith.divf %194, %195 : vector<8x32xf32>
    %197 = vector.extract_strided_slice %188 {offsets = [0, 32], sizes = [8, 32], strides = [1, 1]} : vector<8x96xf32> to vector<8x32xf32>
    %198 = vector.extract_strided_slice %185 {offsets = [0, 32], sizes = [8, 32], strides = [1, 1]} : vector<8x96xf32> to vector<8x32xf32>
    %199 = arith.addf %197, %198 : vector<8x32xf32>
    %200 = arith.negf %199 : vector<8x32xf32>
    %201 = math.exp %200 : vector<8x32xf32>
    %cst_71 = arith.constant 1.000000e+00 : f32
    %202 = vector.broadcast %cst_71 : f32 to vector<8x32xf32>
    %203 = arith.addf %202, %201 : vector<8x32xf32>
    %204 = arith.divf %202, %203 : vector<8x32xf32>
    %205 = vector.extract_strided_slice %188 {offsets = [0, 64], sizes = [8, 32], strides = [1, 1]} : vector<8x96xf32> to vector<8x32xf32>
    %206 = vector.extract_strided_slice %185 {offsets = [0, 64], sizes = [8, 32], strides = [1, 1]} : vector<8x96xf32> to vector<8x32xf32>
    %207 = vector.broadcast %13 : vector<1x32xf32> to vector<8x32xf32>
    %208 = arith.addf %206, %207 : vector<8x32xf32>
    %209 = arith.mulf %196, %208 : vector<8x32xf32>
    %210 = arith.addf %205, %209 : vector<8x32xf32>
    %211 = math.tanh %210 : vector<8x32xf32>
    %cst_72 = arith.constant 1.000000e+00 : f32
    %212 = vector.broadcast %cst_72 : f32 to vector<8x32xf32>
    %213 = arith.subf %212, %204 : vector<8x32xf32>
    %214 = arith.mulf %213, %211 : vector<8x32xf32>
    %215 = arith.mulf %204, %184 : vector<8x32xf32>
    %216 = arith.addf %214, %215 : vector<8x32xf32>
    %c0_73 = arith.constant 0 : index
    %c0_74 = arith.constant 0 : index
    %217 = vector.load %arg10[%c0_73, %c0_74] : memref<8x32xf32, #tpu.memory_space<vmem>>, vector<8x32xf32>
    tpu.vector_store %arg10[%c0_73, %c0_74], %216 {strides = array<i32>} : memref<8x32xf32, #tpu.memory_space<vmem>>, vector<8x32xf32>,
    %c6_i32 = arith.constant 6 : i32
    %c0_75 = arith.constant 0 : index
    %c0_76 = arith.constant 0 : index
    %218 = vector.load %arg10[%c0_75, %c0_76] : memref<8x32xf32, #tpu.memory_space<vmem>>, vector<8x32xf32>
    %cst_77 = arith.constant dense<0.000000e+00> : vector<8x96xf32>
    %219 = tpu.matmul %218, %12, %cst_77 {dimension_numbers = #tpu.dot_dimension_numbers<[1], [0], [0], [1], [0, 0, 1, 1], [], []>} : vector<8x32xf32>, vector<32x96xf32>, vector<8x96xf32> -> vector<8x96xf32>
    %220 = arith.index_cast %c6_i32 : i32 to index
    %c0_78 = arith.constant 0 : index
    %c0_79 = arith.constant 0 : index
    %221 = vector.load %arg11[%220, %c0_78, %c0_79] : memref<8x8x96xf32, #tpu.memory_space<vmem>>, vector<1x8x96xf32>
    %222 = vector.shape_cast %221 : vector<1x8x96xf32> to vector<8x96xf32>
    %223 = vector.extract_strided_slice %222 {offsets = [0, 0], sizes = [8, 32], strides = [1, 1]} : vector<8x96xf32> to vector<8x32xf32>
    %224 = vector.extract_strided_slice %219 {offsets = [0, 0], sizes = [8, 32], strides = [1, 1]} : vector<8x96xf32> to vector<8x32xf32>
    %225 = arith.addf %223, %224 : vector<8x32xf32>
    %226 = arith.negf %225 : vector<8x32xf32>
    %227 = math.exp %226 : vector<8x32xf32>
    %cst_80 = arith.constant 1.000000e+00 : f32
    %228 = vector.broadcast %cst_80 : f32 to vector<8x32xf32>
    %229 = arith.addf %228, %227 : vector<8x32xf32>
    %230 = arith.divf %228, %229 : vector<8x32xf32>
    %231 = vector.extract_strided_slice %222 {offsets = [0, 32], sizes = [8, 32], strides = [1, 1]} : vector<8x96xf32> to vector<8x32xf32>
    %232 = vector.extract_strided_slice %219 {offsets = [0, 32], sizes = [8, 32], strides = [1, 1]} : vector<8x96xf32> to vector<8x32xf32>
    %233 = arith.addf %231, %232 : vector<8x32xf32>
    %234 = arith.negf %233 : vector<8x32xf32>
    %235 = math.exp %234 : vector<8x32xf32>
    %cst_81 = arith.constant 1.000000e+00 : f32
    %236 = vector.broadcast %cst_81 : f32 to vector<8x32xf32>
    %237 = arith.addf %236, %235 : vector<8x32xf32>
    %238 = arith.divf %236, %237 : vector<8x32xf32>
    %239 = vector.extract_strided_slice %222 {offsets = [0, 64], sizes = [8, 32], strides = [1, 1]} : vector<8x96xf32> to vector<8x32xf32>
    %240 = vector.extract_strided_slice %219 {offsets = [0, 64], sizes = [8, 32], strides = [1, 1]} : vector<8x96xf32> to vector<8x32xf32>
    %241 = vector.broadcast %13 : vector<1x32xf32> to vector<8x32xf32>
    %242 = arith.addf %240, %241 : vector<8x32xf32>
    %243 = arith.mulf %230, %242 : vector<8x32xf32>
    %244 = arith.addf %239, %243 : vector<8x32xf32>
    %245 = math.tanh %244 : vector<8x32xf32>
    %cst_82 = arith.constant 1.000000e+00 : f32
    %246 = vector.broadcast %cst_82 : f32 to vector<8x32xf32>
    %247 = arith.subf %246, %238 : vector<8x32xf32>
    %248 = arith.mulf %247, %245 : vector<8x32xf32>
    %249 = arith.mulf %238, %218 : vector<8x32xf32>
    %250 = arith.addf %248, %249 : vector<8x32xf32>
    %c0_83 = arith.constant 0 : index
    %c0_84 = arith.constant 0 : index
    %251 = vector.load %arg10[%c0_83, %c0_84] : memref<8x32xf32, #tpu.memory_space<vmem>>, vector<8x32xf32>
    tpu.vector_store %arg10[%c0_83, %c0_84], %250 {strides = array<i32>} : memref<8x32xf32, #tpu.memory_space<vmem>>, vector<8x32xf32>,
    %c7_i32 = arith.constant 7 : i32
    %c0_85 = arith.constant 0 : index
    %c0_86 = arith.constant 0 : index
    %252 = vector.load %arg10[%c0_85, %c0_86] : memref<8x32xf32, #tpu.memory_space<vmem>>, vector<8x32xf32>
    %cst_87 = arith.constant dense<0.000000e+00> : vector<8x96xf32>
    %253 = tpu.matmul %252, %12, %cst_87 {dimension_numbers = #tpu.dot_dimension_numbers<[1], [0], [0], [1], [0, 0, 1, 1], [], []>} : vector<8x32xf32>, vector<32x96xf32>, vector<8x96xf32> -> vector<8x96xf32>
    %254 = arith.index_cast %c7_i32 : i32 to index
    %c0_88 = arith.constant 0 : index
    %c0_89 = arith.constant 0 : index
    %255 = vector.load %arg11[%254, %c0_88, %c0_89] : memref<8x8x96xf32, #tpu.memory_space<vmem>>, vector<1x8x96xf32>
    %256 = vector.shape_cast %255 : vector<1x8x96xf32> to vector<8x96xf32>
    %257 = vector.extract_strided_slice %256 {offsets = [0, 0], sizes = [8, 32], strides = [1, 1]} : vector<8x96xf32> to vector<8x32xf32>
    %258 = vector.extract_strided_slice %253 {offsets = [0, 0], sizes = [8, 32], strides = [1, 1]} : vector<8x96xf32> to vector<8x32xf32>
    %259 = arith.addf %257, %258 : vector<8x32xf32>
    %260 = arith.negf %259 : vector<8x32xf32>
    %261 = math.exp %260 : vector<8x32xf32>
    %cst_90 = arith.constant 1.000000e+00 : f32
    %262 = vector.broadcast %cst_90 : f32 to vector<8x32xf32>
    %263 = arith.addf %262, %261 : vector<8x32xf32>
    %264 = arith.divf %262, %263 : vector<8x32xf32>
    %265 = vector.extract_strided_slice %256 {offsets = [0, 32], sizes = [8, 32], strides = [1, 1]} : vector<8x96xf32> to vector<8x32xf32>
    %266 = vector.extract_strided_slice %253 {offsets = [0, 32], sizes = [8, 32], strides = [1, 1]} : vector<8x96xf32> to vector<8x32xf32>
    %267 = arith.addf %265, %266 : vector<8x32xf32>
    %268 = arith.negf %267 : vector<8x32xf32>
    %269 = math.exp %268 : vector<8x32xf32>
    %cst_91 = arith.constant 1.000000e+00 : f32
    %270 = vector.broadcast %cst_91 : f32 to vector<8x32xf32>
    %271 = arith.addf %270, %269 : vector<8x32xf32>
    %272 = arith.divf %270, %271 : vector<8x32xf32>
    %273 = vector.extract_strided_slice %256 {offsets = [0, 64], sizes = [8, 32], strides = [1, 1]} : vector<8x96xf32> to vector<8x32xf32>
    %274 = vector.extract_strided_slice %253 {offsets = [0, 64], sizes = [8, 32], strides = [1, 1]} : vector<8x96xf32> to vector<8x32xf32>
    %275 = vector.broadcast %13 : vector<1x32xf32> to vector<8x32xf32>
    %276 = arith.addf %274, %275 : vector<8x32xf32>
    %277 = arith.mulf %264, %276 : vector<8x32xf32>
    %278 = arith.addf %273, %277 : vector<8x32xf32>
    %279 = math.tanh %278 : vector<8x32xf32>
    %cst_92 = arith.constant 1.000000e+00 : f32
    %280 = vector.broadcast %cst_92 : f32 to vector<8x32xf32>
    %281 = arith.subf %280, %272 : vector<8x32xf32>
    %282 = arith.mulf %281, %279 : vector<8x32xf32>
    %283 = arith.mulf %272, %252 : vector<8x32xf32>
    %284 = arith.addf %282, %283 : vector<8x32xf32>
    %c0_93 = arith.constant 0 : index
    %c0_94 = arith.constant 0 : index
    %285 = vector.load %arg10[%c0_93, %c0_94] : memref<8x32xf32, #tpu.memory_space<vmem>>, vector<8x32xf32>
    tpu.vector_store %arg10[%c0_93, %c0_94], %284 {strides = array<i32>} : memref<8x32xf32, #tpu.memory_space<vmem>>, vector<8x32xf32>,
    %c8_i32 = arith.constant 8 : i32
    %c0_i32_95 = arith.constant 0 : i32
    %286 = arith.cmpi eq, %arg1, %c0_i32_95 : i32
    %287 = arith.extui %286 : i1 to i32
    %c0_i32_96 = arith.constant 0 : i32
    %288 = arith.cmpi ne, %287, %c0_i32_96 : i32
    scf.if %288 {
      %c0_97 = arith.constant 0 : index
      %c0_98 = arith.constant 0 : index
      %289 = vector.load %arg10[%c0_97, %c0_98] : memref<8x32xf32, #tpu.memory_space<vmem>>, vector<8x32xf32>
      %c0_99 = arith.constant 0 : index
      %c0_100 = arith.constant 0 : index
      %290 = vector.load %arg7[%c0_99, %c0_100] : memref<32x16xf32, #tpu.memory_space<vmem>>, vector<32x16xf32>
      %cst_101 = arith.constant dense<0.000000e+00> : vector<8x16xf32>
      %291 = tpu.matmul %289, %290, %cst_101 {dimension_numbers = #tpu.dot_dimension_numbers<[1], [0], [0], [1], [0, 0, 1, 1], [], []>} : vector<8x32xf32>, vector<32x16xf32>, vector<8x16xf32> -> vector<8x16xf32>
      %c0_102 = arith.constant 0 : index
      %c0_103 = arith.constant 0 : index
      %292 = vector.load %arg8[%c0_102, %c0_103] : memref<1x16xf32, #tpu.memory_space<vmem>>, vector<1x16xf32>
      %293 = vector.broadcast %292 : vector<1x16xf32> to vector<8x16xf32>
      %294 = arith.addf %291, %293 : vector<8x16xf32>
      %c0_104 = arith.constant 0 : index
      %c0_105 = arith.constant 0 : index
      %295 = vector.load %arg9[%c0_104, %c0_105] : memref<8x16xf32, #tpu.memory_space<vmem>>, vector<8x16xf32>
      tpu.vector_store %arg9[%c0_104, %c0_105], %294 {strides = array<i32>} : memref<8x16xf32, #tpu.memory_space<vmem>>, vector<8x16xf32>,
    } else {
    }
    return
  }
  func.func @transform_0(%arg0: i32, %arg1: i32) -> (i32, i32, i32) {
    %c0_i32 = arith.constant 0 : i32
    %c0_i32_0 = arith.constant 0 : i32
    return %arg1, %arg0, %c0_i32 : i32, i32, i32
  }
  func.func @transform_1(%arg0: i32, %arg1: i32) -> (i32, i32) {
    %c0_i32 = arith.constant 0 : i32
    %c0_i32_0 = arith.constant 0 : i32
    %c0_i32_1 = arith.constant 0 : i32
    return %c0_i32, %c0_i32_0 : i32, i32
  }
  func.func @transform_2(%arg0: i32, %arg1: i32) -> (i32, i32) {
    %c0_i32 = arith.constant 0 : i32
    %c0_i32_0 = arith.constant 0 : i32
    %c0_i32_1 = arith.constant 0 : i32
    return %c0_i32, %c0_i32_0 : i32, i32
  }
  func.func @transform_3(%arg0: i32, %arg1: i32) -> (i32, i32) {
    %c0_i32 = arith.constant 0 : i32
    %c0_i32_0 = arith.constant 0 : i32
    %c0_i32_1 = arith.constant 0 : i32
    return %c0_i32, %c0_i32_0 : i32, i32
  }
  func.func @transform_4(%arg0: i32, %arg1: i32) -> (i32, i32) {
    %c0_i32 = arith.constant 0 : i32
    %c0_i32_0 = arith.constant 0 : i32
    %c0_i32_1 = arith.constant 0 : i32
    return %c0_i32, %c0_i32_0 : i32, i32
  }
  func.func @transform_5(%arg0: i32, %arg1: i32) -> (i32, i32) {
    %c0_i32 = arith.constant 0 : i32
    %c0_i32_0 = arith.constant 0 : i32
    %c0_i32_1 = arith.constant 0 : i32
    return %c0_i32, %c0_i32_0 : i32, i32
  }
  func.func @transform_6(%arg0: i32, %arg1: i32) -> (i32, i32) {
    %c0_i32 = arith.constant 0 : i32
    %c0_i32_0 = arith.constant 0 : i32
    %c0_i32_1 = arith.constant 0 : i32
    return %c0_i32, %c0_i32_0 : i32, i32
  }
  func.func @transform_7(%arg0: i32, %arg1: i32) -> (i32, i32) {
    %c0_i32 = arith.constant 0 : i32
    %c0_i32_0 = arith.constant 0 : i32
    return %arg0, %c0_i32 : i32, i32
  }
}

</mosaic_0001>

<llo_original>
// kernel: tpu_custom_call.1
$region0: #{tpu_custom_call.1}
  #allocation0 [shape = 'u32[]', space=smem, size = 0x4, offset = 0x4, fixed_abs, tag = 'smem constant byte address 0x4 - core index']
  #allocation1 [shape = 'u32[72,128]{1,0:T(1,128)}', space=vmem, size = 0x9000, scoped, tag = 'internal scratch']
  #allocation2 [shape = 'f32[8,32]{1,0:T(8,128)}', space=vmem, size = 0x1000, scoped, tag = 'scratch operand']
  #allocation3 [shape = 'f32[8,8,96]{2,1,0:T(8,128)}', space=vmem, size = 0x8000, scoped, tag = 'scratch operand']
  %s0 = inlined_call_operand.hbm [shape: f32[8,8,16], index: 0, kind: input, shape index: {}]
  %s1 = inlined_call_operand.vmem [shape: f32[16,96], index: 1, kind: input, shape index: {}]
  %s2 = inlined_call_operand.vmem [shape: f32[32,96], index: 2, kind: input, shape index: {}]
  %s3 = inlined_call_operand.vmem [shape: f32[1,96], index: 3, kind: input, shape index: {}]
  %s4 = inlined_call_operand.vmem [shape: f32[1,32], index: 4, kind: input, shape index: {}]
  %s5 = inlined_call_operand.vmem [shape: f32[32,16], index: 5, kind: input, shape index: {}]
  %s6 = inlined_call_operand.vmem [shape: f32[1,16], index: 6, kind: input, shape index: {}]
  %s7 = inlined_call_operand.hbm [shape: f32[8,16], index: 7, kind: output, shape index: {}]
  %s8 = sld [smem:[#allocation0]]
  $region50: #{tpu_custom_call.1} parent=0
    _
  %s10 = ssub.s32 1, %s8
  %s11 = scalar_select 0, %s10, %s8
  $region1: #{tpu_custom_call.1} parent=0
    #allocation4 [shape = 'u8[32768]{0}', space=vmem, size = 0x8000, scoped, tag = 'input window, operand 0, single buffered']
    #allocation5 [shape = 's32[1]{0}', space=sflag, size = 0x4, scoped, tag = 'scoped memory for tpu_custom_call.1']
    #allocation6 [shape = 's32[1]{0}', space=sflag, size = 0x4, scoped, tag = 'scoped memory for tpu_custom_call.1']
    #allocation7 [shape = 'u8[4096]{0}', space=vmem, size = 0x1000, scoped, tag = 'output window, operand 0, single buffered']
    %12 = vsyncpa [#allocation5], 0
    %13 = vsyncpa [#allocation6], 0
    // Predicated region
    $region2: #{tpu_custom_call.1} parent=1 // pred_check
      _
    $region3: #{tpu_custom_call.1} parent=1 // pred_check_branch
      %15 = sbr.rel (0) target = $region5
    $region4: #{tpu_custom_call.1} parent=1 // pred_region
      %17 = vsyncadd [#allocation5], 0
      %s18 = sshll.u32 %s0, 4
      %s19 = int_to_ptr.hbm [resolvable:$true] %s18
      %s20 = sshll.u32 [#allocation4], 4
      %s21 = int_to_ptr.vmem [resolvable:$true] %s20
      %26 = dma.hbm_to_vmem [thread:$0]  %s19, 1024, %s21, [#allocation5], 128, 128, 8
    $region5: #{tpu_custom_call.1} parent=1 // pred_fallthru
      _
    // Predicated region
    $region6: #{tpu_custom_call.1} parent=1 // pred_check
      _
    $region7: #{tpu_custom_call.1} parent=1 // pred_check_branch
      %28 = sbr.rel (0) target = $region9
    $region8: #{tpu_custom_call.1} parent=1 // pred_region
      _
    $region9: #{tpu_custom_call.1} parent=1 // pred_fallthru
      _
    // Predicated region
    $region10: #{tpu_custom_call.1} parent=1 // pred_check
      _
    $region11: #{tpu_custom_call.1} parent=1 // pred_check_branch
      %30 = sbr.rel (0) target = $region13
    $region12: #{tpu_custom_call.1} parent=1 // pred_region
      _
    $region13: #{tpu_custom_call.1} parent=1 // pred_fallthru
      _
    // Predicated region
    $region14: #{tpu_custom_call.1} parent=1 // pred_check
      _
    $region15: #{tpu_custom_call.1} parent=1 // pred_check_branch
      %32 = sbr.rel (0) target = $region17
    $region16: #{tpu_custom_call.1} parent=1 // pred_region
      _
    $region17: #{tpu_custom_call.1} parent=1 // pred_fallthru
      _
    // Predicated region
    $region18: #{tpu_custom_call.1} parent=1 // pred_check
      _
    $region19: #{tpu_custom_call.1} parent=1 // pred_check_branch
      %34 = sbr.rel (0) target = $region21
    $region20: #{tpu_custom_call.1} parent=1 // pred_region
      _
    $region21: #{tpu_custom_call.1} parent=1 // pred_fallthru
      _
    // Predicated region
    $region22: #{tpu_custom_call.1} parent=1 // pred_check
      _
    $region23: #{tpu_custom_call.1} parent=1 // pred_check_branch
      %36 = sbr.rel (0) target = $region25
    $region24: #{tpu_custom_call.1} parent=1 // pred_region
      _
    $region25: #{tpu_custom_call.1} parent=1 // pred_fallthru
      _
    // Predicated region
    $region26: #{tpu_custom_call.1} parent=1 // pred_check
      _
    $region27: #{tpu_custom_call.1} parent=1 // pred_check_branch
      %38 = sbr.rel (0) target = $region29
    $region28: #{tpu_custom_call.1} parent=1 // pred_region
      _
    $region29: #{tpu_custom_call.1} parent=1 // pred_fallthru
      _
    // Predicated region
    $region30: #{tpu_custom_call.1} parent=1 // pred_check
      _
    $region31: #{tpu_custom_call.1} parent=1 // pred_check_branch
      %40 = sbr.rel (0) target = $region33
    $region32: #{tpu_custom_call.1} parent=1 // pred_region
      %42 = dma.done [#allocation5], 1024
    $region33: #{tpu_custom_call.1} parent=1 // pred_fallthru
      _
    %p43 = scmp.eq.s32.totalorder 0, 0
    // Predicated region
    $region34: #{tpu_custom_call.1} parent=1 // pred_check
      %p44 = pneg %p43
    $region35: #{tpu_custom_call.1} parent=1 // pred_check_branch
      %46 = sbr.rel (%p44) target = $region37
    $region36: #{tpu_custom_call.1} parent=1 // pred_region
      %vm47 = vcmask 261120
      %48 = vst.msk [vmem:[#allocation2] sm:$0xff] %vm47, 0.0
    $region37: #{tpu_custom_call.1} parent=1 // pred_fallthru
      _
    %v49 = vld [vmem:[#allocation4] sm:$0xff]
    %v50 = vld [vmem:[#allocation4 + $0x8] sm:$0xff]
    %v51 = vld [vmem:[#allocation4 + $0x10] sm:$0xff]
    %v52 = vld [vmem:[#allocation4 + $0x18] sm:$0xff]
    %v53 = vld [vmem:[#allocation4 + $0x20] sm:$0xff]
    %v54 = vld [vmem:[#allocation4 + $0x28] sm:$0xff]
    %v55 = vld [vmem:[#allocation4 + $0x30] sm:$0xff]
    %v56 = vld [vmem:[#allocation4 + $0x38] sm:$0xff]
    %v57 = vld [vmem:[%s1] sm:$0xff]
    %v58 = vld [vmem:[%s1 + $0x8] sm:$0xff]
    %v59 = vld [vmem:[%s3] sm:$0x1]
    %v61 = vperm.slane %v59, 0
    %vm63 = vcmask 130048
    %v65 = vsel %vm63, %v49, 0
    %v68 = vsel %vm63, %v50, 0
    %v71 = vsel %vm63, %v51, 0
    %v74 = vsel %vm63, %v52, 0
    %v77 = vsel %vm63, %v53, 0
    %v80 = vsel %vm63, %v54, 0
    %v83 = vsel %vm63, %v55, 0
    %v86 = vsel %vm63, %v56, 0
    %88 = vmatpush.msra.mxu0 0.0
    %89 = vmatpush.msra.mxu0 0.0
    %90 = vmatpush.msra.mxu0 0.0
    %91 = vmatpush.msra.mxu0 0.0
    %92 = vmatpush.msra.mxu0 0.0
    %93 = vmatpush.msra.mxu0 0.0
    %94 = vmatpush.msra.mxu0 0.0
    %95 = vmatpush.msra.mxu0 0.0
    %96 = vmatpush.msra.mxu0 0.0
    %97 = vmatpush.msra.mxu0 0.0
    %98 = vmatpush.msra.mxu0 0.0
    %99 = vmatpush.msra.mxu0 0.0
    %100 = vmatpush.msra.mxu0 0.0
    %101 = vmatpush.msra.mxu0 0.0
    %102 = vmatpush.msra.mxu0 %v58
    %103 = vmatpush.msra.mxu0 %v57
    %104 = vmatmul.f32.gmra.mxu0 %v65
    %v105 = vpop.f32.mrf.mxu0
    %v106 = vadd.f32 %v61, %v105
    %107 = vmatmul.f32.gmra.mxu0 %v68
    %v108 = vpop.f32.mrf.mxu0
    %v109 = vadd.f32 %v61, %v108
    %110 = vmatmul.f32.gmra.mxu0 %v71
    %v111 = vpop.f32.mrf.mxu0
    %v112 = vadd.f32 %v61, %v111
    %113 = vmatmul.f32.gmra.mxu0 %v74
    %v114 = vpop.f32.mrf.mxu0
    %v115 = vadd.f32 %v61, %v114
    %116 = vmatmul.f32.gmra.mxu0 %v77
    %v117 = vpop.f32.mrf.mxu0
    %v118 = vadd.f32 %v61, %v117
    %119 = vmatmul.f32.gmra.mxu0 %v80
    %v120 = vpop.f32.mrf.mxu0
    %v121 = vadd.f32 %v61, %v120
    %122 = vmatmul.f32.gmra.mxu0 %v83
    %v123 = vpop.f32.mrf.mxu0
    %v124 = vadd.f32 %v61, %v123
    %125 = vmatmul.f32.gmra.mxu0 %v86
    %v126 = vpop.f32.mrf.mxu0
    %v127 = vadd.f32 %v61, %v126
    %128 = vdwg.mxu0
    %vm129 = vcmask 785408
    %130 = vst.msk [vmem:[#allocation3] sm:$0xff] %vm129, %v106
    %131 = vst.msk [vmem:[#allocation3 + $0x8] sm:$0xff] %vm129, %v109
    %132 = vst.msk [vmem:[#allocation3 + $0x10] sm:$0xff] %vm129, %v112
    %133 = vst.msk [vmem:[#allocation3 + $0x18] sm:$0xff] %vm129, %v115
    %134 = vst.msk [vmem:[#allocation3 + $0x20] sm:$0xff] %vm129, %v118
    %135 = vst.msk [vmem:[#allocation3 + $0x28] sm:$0xff] %vm129, %v121
    %136 = vst.msk [vmem:[#allocation3 + $0x30] sm:$0xff] %vm129, %v124
    %137 = vst.msk [vmem:[#allocation3 + $0x38] sm:$0xff] %vm129, %v127
    %v138 = vld [vmem:[%s2] sm:$0xff]
    %v139 = vld [vmem:[%s2 + $0x8] sm:$0xff]
    %v140 = vld [vmem:[%s2 + $0x10] sm:$0xff]
    %v141 = vld [vmem:[%s2 + $0x18] sm:$0xff]
    %v142 = vld [vmem:[%s4] sm:$0x1]
    %v143 = vld [vmem:[#allocation2] sm:$0xff]
    %vm144 = vcmask 261120
    %v146 = vsel %vm144, %v143, 0
    %148 = vmatpush.msra.mxu0 0.0
    %149 = vmatpush.msra.mxu0 0.0
    %150 = vmatpush.msra.mxu0 0.0
    %151 = vmatpush.msra.mxu0 0.0
    %152 = vmatpush.msra.mxu0 0.0
    %153 = vmatpush.msra.mxu0 0.0
    %154 = vmatpush.msra.mxu0 0.0
    %155 = vmatpush.msra.mxu0 0.0
    %156 = vmatpush.msra.mxu0 0.0
    %157 = vmatpush.msra.mxu0 0.0
    %158 = vmatpush.msra.mxu0 0.0
    %159 = vmatpush.msra.mxu0 0.0
    %160 = vmatpush.msra.mxu0 %v141
    %161 = vmatpush.msra.mxu0 %v140
    %162 = vmatpush.msra.mxu0 %v139
    %163 = vmatpush.msra.mxu0 %v138
    %164 = vmatmul.f32.gmra.mxu0 %v146
    %v165 = vpop.f32.mrf.mxu0
    %v166 = vadd.f32 0.0, %v165
    %167 = vdwg.mxu0
    %v168 = vld [vmem:[#allocation3] sm:$0xff]
    %v169 = vadd.f32 %v168, %v166
    %v170 = vxor.u32 %v169, 2147483648
    %v171 = vmul.f32 %v170, 1.442695
    %v172 = vpow.pop %v171
    %v173 = vadd.f32 %v172, 1.0
    %v174 = vrcp.pop %v173
    %v175 = vmul.f32 %v173, %v174
    %v176 = vsub.f32 1.0, %v175
    %v177 = vmul.f32 %v174, %v176
    %v178 = vadd.f32 %v174, %v177
    %vm179 = vweird.f32 %v173
    %vm180 = vweird.f32 %v174
    %vm181 = vmor %vm179, %vm180
    %v182 = vsel %vm181, %v174, %v178
    %v183 = vand.u32 2147483647, %v173
    %vm184 = vcmp.eq.f32.partialorder %v183, 8.507059e+37
    %v185 = vand.u32 %v173, 2147483648
    %v186 = vor.u32 1.1754944e-38, %v185
    %v187 = vsel %vm184, %v186, %v182
    %v188 = vmul.f32 1.0, %v187
    %v190 = vperm.slane %v142, 0
    %191 = vrot.lane.b32.xlu0 %v190, 64
    %v192 = vpop.permute.xlu0 %191
    %v194 = vadd.f32 %v166, %v192
    %196 = vrot.lane.b32.xlu0 %v194, 64
    %v197 = vpop.permute.xlu0 %196
    %v199 = vmul.f32 %v188, %v197
    %201 = vrot.lane.b32.xlu0 %v199, 64
    %v202 = vpop.permute.xlu0 %201
    %v204 = vadd.f32 %v168, %v202
    %v205 = vtanh.pop %v204
    %v206 = vsub.f32 1.0, %v188
    %208 = vrot.lane.b32.xlu0 %v205, 96
    %v209 = vpop.permute.xlu0 %208
    %v211 = vmul.f32 %v206, %v209
    %212 = vrot.lane.b32.xlu0 %v143, 32
    %v213 = vpop.permute.xlu0 %212
    %v215 = vmul.f32 %v188, %v213
    %v216 = vadd.f32 %v211, %v215
    %218 = vrot.lane.b32.xlu0 %v216, 96
    %v219 = vpop.permute.xlu0 %218
    %221 = vst.msk [vmem:[#allocation2] sm:$0xff] %vm144, %v219
    %v222 = vld [vmem:[#allocation2] sm:$0xff]
    %v224 = vsel %vm144, %v222, 0
    %226 = vmatpush.msra.mxu0 0.0
    %227 = vmatpush.msra.mxu0 0.0
    %228 = vmatpush.msra.mxu0 0.0
    %229 = vmatpush.msra.mxu0 0.0
    %230 = vmatpush.msra.mxu0 0.0
    %231 = vmatpush.msra.mxu0 0.0
    %232 = vmatpush.msra.mxu0 0.0
    %233 = vmatpush.msra.mxu0 0.0
    %234 = vmatpush.msra.mxu0 0.0
    %235 = vmatpush.msra.mxu0 0.0
    %236 = vmatpush.msra.mxu0 0.0
    %237 = vmatpush.msra.mxu0 0.0
    %238 = vmatpush.msra.mxu0 %v141
    %239 = vmatpush.msra.mxu0 %v140
    %240 = vmatpush.msra.mxu0 %v139
    %241 = vmatpush.msra.mxu0 %v138
    %242 = vmatmul.f32.gmra.mxu0 %v224
    %v243 = vpop.f32.mrf.mxu0
    %v244 = vadd.f32 0.0, %v243
    %245 = vdwg.mxu0
    %s246 = scalar_lea.vmem [#allocation3], 8
    %v247 = vld [vmem:[%s246] sm:$0xff]
    %v248 = vadd.f32 %v247, %v244
    %v249 = vxor.u32 %v248, 2147483648
    %v250 = vmul.f32 %v249, 1.442695
    %v251 = vpow.pop %v250
    %v252 = vadd.f32 %v251, 1.0
    %v253 = vrcp.pop %v252
    %v254 = vmul.f32 %v252, %v253
    %v255 = vsub.f32 1.0, %v254
    %v256 = vmul.f32 %v253, %v255
    %v257 = vadd.f32 %v253, %v256
    %vm258 = vweird.f32 %v252
    %vm259 = vweird.f32 %v253
    %vm260 = vmor %vm258, %vm259
    %v261 = vsel %vm260, %v253, %v257
    %v262 = vand.u32 2147483647, %v252
    %vm263 = vcmp.eq.f32.partialorder %v262, 8.507059e+37
    %v264 = vand.u32 %v252, 2147483648
    %v265 = vor.u32 1.1754944e-38, %v264
    %v266 = vsel %vm263, %v265, %v261
    %v267 = vmul.f32 1.0, %v266
    %v268 = vadd.f32 %v244, %v192
    %270 = vrot.lane.b32.xlu0 %v268, 64
    %v271 = vpop.permute.xlu0 %270
    %v273 = vmul.f32 %v267, %v271
    %275 = vrot.lane.b32.xlu0 %v273, 64
    %v276 = vpop.permute.xlu0 %275
    %v278 = vadd.f32 %v247, %v276
    %v279 = vtanh.pop %v278
    %v280 = vsub.f32 1.0, %v267
    %282 = vrot.lane.b32.xlu0 %v279, 96
    %v283 = vpop.permute.xlu0 %282
    %v285 = vmul.f32 %v280, %v283
    %286 = vrot.lane.b32.xlu0 %v222, 32
    %v287 = vpop.permute.xlu0 %286
    %v289 = vmul.f32 %v267, %v287
    %v290 = vadd.f32 %v285, %v289
    %292 = vrot.lane.b32.xlu0 %v290, 96
    %v293 = vpop.permute.xlu0 %292
    %295 = vst.msk [vmem:[#allocation2] sm:$0xff] %vm144, %v293
    %v296 = vld [vmem:[#allocation2] sm:$0xff]
    %v298 = vsel %vm144, %v296, 0
    %300 = vmatpush.msra.mxu0 0.0
    %301 = vmatpush.msra.mxu0 0.0
    %302 = vmatpush.msra.mxu0 0.0
    %303 = vmatpush.msra.mxu0 0.0
    %304 = vmatpush.msra.mxu0 0.0
    %305 = vmatpush.msra.mxu0 0.0
    %306 = vmatpush.msra.mxu0 0.0
    %307 = vmatpush.msra.mxu0 0.0
    %308 = vmatpush.msra.mxu0 0.0
    %309 = vmatpush.msra.mxu0 0.0
    %310 = vmatpush.msra.mxu0 0.0
    %311 = vmatpush.msra.mxu0 0.0
    %312 = vmatpush.msra.mxu0 %v141
    %313 = vmatpush.msra.mxu0 %v140
    %314 = vmatpush.msra.mxu0 %v139
    %315 = vmatpush.msra.mxu0 %v138
    %316 = vmatmul.f32.gmra.mxu0 %v298
    %v317 = vpop.f32.mrf.mxu0
    %v318 = vadd.f32 0.0, %v317
    %319 = vdwg.mxu0
    %s320 = scalar_lea.vmem [#allocation3], 16
    %v321 = vld [vmem:[%s320] sm:$0xff]
    %v322 = vadd.f32 %v321, %v318
    %v323 = vxor.u32 %v322, 2147483648
    %v324 = vmul.f32 %v323, 1.442695
    %v325 = vpow.pop %v324
    %v326 = vadd.f32 %v325, 1.0
    %v327 = vrcp.pop %v326
    %v328 = vmul.f32 %v326, %v327
    %v329 = vsub.f32 1.0, %v328
    %v330 = vmul.f32 %v327, %v329
    %v331 = vadd.f32 %v327, %v330
    %vm332 = vweird.f32 %v326
    %vm333 = vweird.f32 %v327
    %vm334 = vmor %vm332, %vm333
    %v335 = vsel %vm334, %v327, %v331
    %v336 = vand.u32 2147483647, %v326
    %vm337 = vcmp.eq.f32.partialorder %v336, 8.507059e+37
    %v338 = vand.u32 %v326, 2147483648
    %v339 = vor.u32 1.1754944e-38, %v338
    %v340 = vsel %vm337, %v339, %v335
    %v341 = vmul.f32 1.0, %v340
    %v342 = vadd.f32 %v318, %v192
    %344 = vrot.lane.b32.xlu0 %v342, 64
    %v345 = vpop.permute.xlu0 %344
    %v347 = vmul.f32 %v341, %v345
    %349 = vrot.lane.b32.xlu0 %v347, 64
    %v350 = vpop.permute.xlu0 %349
    %v352 = vadd.f32 %v321, %v350
    %v353 = vtanh.pop %v352
    %v354 = vsub.f32 1.0, %v341
    %356 = vrot.lane.b32.xlu0 %v353, 96
    %v357 = vpop.permute.xlu0 %356
    %v359 = vmul.f32 %v354, %v357
    %360 = vrot.lane.b32.xlu0 %v296, 32
    %v361 = vpop.permute.xlu0 %360
    %v363 = vmul.f32 %v341, %v361
    %v364 = vadd.f32 %v359, %v363
    %366 = vrot.lane.b32.xlu0 %v364, 96
    %v367 = vpop.permute.xlu0 %366
    %369 = vst.msk [vmem:[#allocation2] sm:$0xff] %vm144, %v367
    %v370 = vld [vmem:[#allocation2] sm:$0xff]
    %v372 = vsel %vm144, %v370, 0
    %374 = vmatpush.msra.mxu0 0.0
    %375 = vmatpush.msra.mxu0 0.0
    %376 = vmatpush.msra.mxu0 0.0
    %377 = vmatpush.msra.mxu0 0.0
    %378 = vmatpush.msra.mxu0 0.0
    %379 = vmatpush.msra.mxu0 0.0
    %380 = vmatpush.msra.mxu0 0.0
    %381 = vmatpush.msra.mxu0 0.0
    %382 = vmatpush.msra.mxu0 0.0
    %383 = vmatpush.msra.mxu0 0.0
    %384 = vmatpush.msra.mxu0 0.0
    %385 = vmatpush.msra.mxu0 0.0
    %386 = vmatpush.msra.mxu0 %v141
    %387 = vmatpush.msra.mxu0 %v140
    %388 = vmatpush.msra.mxu0 %v139
    %389 = vmatpush.msra.mxu0 %v138
    %390 = vmatmul.f32.gmra.mxu0 %v372
    %v391 = vpop.f32.mrf.mxu0
    %v392 = vadd.f32 0.0, %v391
    %393 = vdwg.mxu0
    %s394 = scalar_lea.vmem [#allocation3], 24
    %v395 = vld [vmem:[%s394] sm:$0xff]
    %v396 = vadd.f32 %v395, %v392
    %v397 = vxor.u32 %v396, 2147483648
    %v398 = vmul.f32 %v397, 1.442695
    %v399 = vpow.pop %v398
    %v400 = vadd.f32 %v399, 1.0
    %v401 = vrcp.pop %v400
    %v402 = vmul.f32 %v400, %v401
    %v403 = vsub.f32 1.0, %v402
    %v404 = vmul.f32 %v401, %v403
    %v405 = vadd.f32 %v401, %v404
    %vm406 = vweird.f32 %v400
    %vm407 = vweird.f32 %v401
    %vm408 = vmor %vm406, %vm407
    %v409 = vsel %vm408, %v401, %v405
    %v410 = vand.u32 2147483647, %v400
    %vm411 = vcmp.eq.f32.partialorder %v410, 8.507059e+37
    %v412 = vand.u32 %v400, 2147483648
    %v413 = vor.u32 1.1754944e-38, %v412
    %v414 = vsel %vm411, %v413, %v409
    %v415 = vmul.f32 1.0, %v414
    %v416 = vadd.f32 %v392, %v192
    %418 = vrot.lane.b32.xlu0 %v416, 64
    %v419 = vpop.permute.xlu0 %418
    %v421 = vmul.f32 %v415, %v419
    %423 = vrot.lane.b32.xlu0 %v421, 64
    %v424 = vpop.permute.xlu0 %423
    %v426 = vadd.f32 %v395, %v424
    %v427 = vtanh.pop %v426
    %v428 = vsub.f32 1.0, %v415
    %430 = vrot.lane.b32.xlu0 %v427, 96
    %v431 = vpop.permute.xlu0 %430
    %v433 = vmul.f32 %v428, %v431
    %434 = vrot.lane.b32.xlu0 %v370, 32
    %v435 = vpop.permute.xlu0 %434
    %v437 = vmul.f32 %v415, %v435
    %v438 = vadd.f32 %v433, %v437
    %440 = vrot.lane.b32.xlu0 %v438, 96
    %v441 = vpop.permute.xlu0 %440
    %443 = vst.msk [vmem:[#allocation2] sm:$0xff] %vm144, %v441
    %v444 = vld [vmem:[#allocation2] sm:$0xff]
    %v446 = vsel %vm144, %v444, 0
    %448 = vmatpush.msra.mxu0 0.0
    %449 = vmatpush.msra.mxu0 0.0
    %450 = vmatpush.msra.mxu0 0.0
    %451 = vmatpush.msra.mxu0 0.0
    %452 = vmatpush.msra.mxu0 0.0
    %453 = vmatpush.msra.mxu0 0.0
    %454 = vmatpush.msra.mxu0 0.0
    %455 = vmatpush.msra.mxu0 0.0
    %456 = vmatpush.msra.mxu0 0.0
    %457 = vmatpush.msra.mxu0 0.0
    %458 = vmatpush.msra.mxu0 0.0
    %459 = vmatpush.msra.mxu0 0.0
    %460 = vmatpush.msra.mxu0 %v141
    %461 = vmatpush.msra.mxu0 %v140
    %462 = vmatpush.msra.mxu0 %v139
    %463 = vmatpush.msra.mxu0 %v138
    %464 = vmatmul.f32.gmra.mxu0 %v446
    %v465 = vpop.f32.mrf.mxu0
    %v466 = vadd.f32 0.0, %v465
    %467 = vdwg.mxu0
    %s468 = scalar_lea.vmem [#allocation3], 32
    %v469 = vld [vmem:[%s468] sm:$0xff]
    %v470 = vadd.f32 %v469, %v466
    %v471 = vxor.u32 %v470, 2147483648
    %v472 = vmul.f32 %v471, 1.442695
    %v473 = vpow.pop %v472
    %v474 = vadd.f32 %v473, 1.0
    %v475 = vrcp.pop %v474
    %v476 = vmul.f32 %v474, %v475
    %v477 = vsub.f32 1.0, %v476
    %v478 = vmul.f32 %v475, %v477
    %v479 = vadd.f32 %v475, %v478
    %vm480 = vweird.f32 %v474
    %vm481 = vweird.f32 %v475
    %vm482 = vmor %vm480, %vm481
    %v483 = vsel %vm482, %v475, %v479
    %v484 = vand.u32 2147483647, %v474
    %vm485 = vcmp.eq.f32.partialorder %v484, 8.507059e+37
    %v486 = vand.u32 %v474, 2147483648
    %v487 = vor.u32 1.1754944e-38, %v486
    %v488 = vsel %vm485, %v487, %v483
    %v489 = vmul.f32 1.0, %v488
    %v490 = vadd.f32 %v466, %v192
    %492 = vrot.lane.b32.xlu0 %v490, 64
    %v493 = vpop.permute.xlu0 %492
    %v495 = vmul.f32 %v489, %v493
    %497 = vrot.lane.b32.xlu0 %v495, 64
    %v498 = vpop.permute.xlu0 %497
    %v500 = vadd.f32 %v469, %v498
    %v501 = vtanh.pop %v500
    %v502 = vsub.f32 1.0, %v489
    %504 = vrot.lane.b32.xlu0 %v501, 96
    %v505 = vpop.permute.xlu0 %504
    %v507 = vmul.f32 %v502, %v505
    %508 = vrot.lane.b32.xlu0 %v444, 32
    %v509 = vpop.permute.xlu0 %508
    %v511 = vmul.f32 %v489, %v509
    %v512 = vadd.f32 %v507, %v511
    %514 = vrot.lane.b32.xlu0 %v512, 96
    %v515 = vpop.permute.xlu0 %514
    %517 = vst.msk [vmem:[#allocation2] sm:$0xff] %vm144, %v515
    %v518 = vld [vmem:[#allocation2] sm:$0xff]
    %v520 = vsel %vm144, %v518, 0
    %522 = vmatpush.msra.mxu0 0.0
    %523 = vmatpush.msra.mxu0 0.0
    %524 = vmatpush.msra.mxu0 0.0
    %525 = vmatpush.msra.mxu0 0.0
    %526 = vmatpush.msra.mxu0 0.0
    %527 = vmatpush.msra.mxu0 0.0
    %528 = vmatpush.msra.mxu0 0.0
    %529 = vmatpush.msra.mxu0 0.0
    %530 = vmatpush.msra.mxu0 0.0
    %531 = vmatpush.msra.mxu0 0.0
    %532 = vmatpush.msra.mxu0 0.0
    %533 = vmatpush.msra.mxu0 0.0
    %534 = vmatpush.msra.mxu0 %v141
    %535 = vmatpush.msra.mxu0 %v140
    %536 = vmatpush.msra.mxu0 %v139
    %537 = vmatpush.msra.mxu0 %v138
    %538 = vmatmul.f32.gmra.mxu0 %v520
    %v539 = vpop.f32.mrf.mxu0
    %v540 = vadd.f32 0.0, %v539
    %541 = vdwg.mxu0
    %s542 = scalar_lea.vmem [#allocation3], 40
    %v543 = vld [vmem:[%s542] sm:$0xff]
    %v544 = vadd.f32 %v543, %v540
    %v545 = vxor.u32 %v544, 2147483648
    %v546 = vmul.f32 %v545, 1.442695
    %v547 = vpow.pop %v546
    %v548 = vadd.f32 %v547, 1.0
    %v549 = vrcp.pop %v548
    %v550 = vmul.f32 %v548, %v549
    %v551 = vsub.f32 1.0, %v550
    %v552 = vmul.f32 %v549, %v551
    %v553 = vadd.f32 %v549, %v552
    %vm554 = vweird.f32 %v548
    %vm555 = vweird.f32 %v549
    %vm556 = vmor %vm554, %vm555
    %v557 = vsel %vm556, %v549, %v553
    %v558 = vand.u32 2147483647, %v548
    %vm559 = vcmp.eq.f32.partialorder %v558, 8.507059e+37
    %v560 = vand.u32 %v548, 2147483648
    %v561 = vor.u32 1.1754944e-38, %v560
    %v562 = vsel %vm559, %v561, %v557
    %v563 = vmul.f32 1.0, %v562
    %v564 = vadd.f32 %v540, %v192
    %566 = vrot.lane.b32.xlu0 %v564, 64
    %v567 = vpop.permute.xlu0 %566
    %v569 = vmul.f32 %v563, %v567
    %571 = vrot.lane.b32.xlu0 %v569, 64
    %v572 = vpop.permute.xlu0 %571
    %v574 = vadd.f32 %v543, %v572
    %v575 = vtanh.pop %v574
    %v576 = vsub.f32 1.0, %v563
    %578 = vrot.lane.b32.xlu0 %v575, 96
    %v579 = vpop.permute.xlu0 %578
    %v581 = vmul.f32 %v576, %v579
    %582 = vrot.lane.b32.xlu0 %v518, 32
    %v583 = vpop.permute.xlu0 %582
    %v585 = vmul.f32 %v563, %v583
    %v586 = vadd.f32 %v581, %v585
    %588 = vrot.lane.b32.xlu0 %v586, 96
    %v589 = vpop.permute.xlu0 %588
    %591 = vst.msk [vmem:[#allocation2] sm:$0xff] %vm144, %v589
    %v592 = vld [vmem:[#allocation2] sm:$0xff]
    %v594 = vsel %vm144, %v592, 0
    %596 = vmatpush.msra.mxu0 0.0
    %597 = vmatpush.msra.mxu0 0.0
    %598 = vmatpush.msra.mxu0 0.0
    %599 = vmatpush.msra.mxu0 0.0
    %600 = vmatpush.msra.mxu0 0.0
    %601 = vmatpush.msra.mxu0 0.0
    %602 = vmatpush.msra.mxu0 0.0
    %603 = vmatpush.msra.mxu0 0.0
    %604 = vmatpush.msra.mxu0 0.0
    %605 = vmatpush.msra.mxu0 0.0
    %606 = vmatpush.msra.mxu0 0.0
    %607 = vmatpush.msra.mxu0 0.0
    %608 = vmatpush.msra.mxu0 %v141
    %609 = vmatpush.msra.mxu0 %v140
    %610 = vmatpush.msra.mxu0 %v139
    %611 = vmatpush.msra.mxu0 %v138
    %612 = vmatmul.f32.gmra.mxu0 %v594
    %v613 = vpop.f32.mrf.mxu0
    %v614 = vadd.f32 0.0, %v613
    %615 = vdwg.mxu0
    %s616 = scalar_lea.vmem [#allocation3], 48
    %v617 = vld [vmem:[%s616] sm:$0xff]
    %v618 = vadd.f32 %v617, %v614
    %v619 = vxor.u32 %v618, 2147483648
    %v620 = vmul.f32 %v619, 1.442695
    %v621 = vpow.pop %v620
    %v622 = vadd.f32 %v621, 1.0
    %v623 = vrcp.pop %v622
    %v624 = vmul.f32 %v622, %v623
    %v625 = vsub.f32 1.0, %v624
    %v626 = vmul.f32 %v623, %v625
    %v627 = vadd.f32 %v623, %v626
    %vm628 = vweird.f32 %v622
    %vm629 = vweird.f32 %v623
    %vm630 = vmor %vm628, %vm629
    %v631 = vsel %vm630, %v623, %v627
    %v632 = vand.u32 2147483647, %v622
    %vm633 = vcmp.eq.f32.partialorder %v632, 8.507059e+37
    %v634 = vand.u32 %v622, 2147483648
    %v635 = vor.u32 1.1754944e-38, %v634
    %v636 = vsel %vm633, %v635, %v631
    %v637 = vmul.f32 1.0, %v636
    %v638 = vadd.f32 %v614, %v192
    %640 = vrot.lane.b32.xlu0 %v638, 64
    %v641 = vpop.permute.xlu0 %640
    %v643 = vmul.f32 %v637, %v641
    %645 = vrot.lane.b32.xlu0 %v643, 64
    %v646 = vpop.permute.xlu0 %645
    %v648 = vadd.f32 %v617, %v646
    %v649 = vtanh.pop %v648
    %v650 = vsub.f32 1.0, %v637
    %652 = vrot.lane.b32.xlu0 %v649, 96
    %v653 = vpop.permute.xlu0 %652
    %v655 = vmul.f32 %v650, %v653
    %656 = vrot.lane.b32.xlu0 %v592, 32
    %v657 = vpop.permute.xlu0 %656
    %v659 = vmul.f32 %v637, %v657
    %v660 = vadd.f32 %v655, %v659
    %662 = vrot.lane.b32.xlu0 %v660, 96
    %v663 = vpop.permute.xlu0 %662
    %665 = vst.msk [vmem:[#allocation2] sm:$0xff] %vm144, %v663
    %v666 = vld [vmem:[#allocation2] sm:$0xff]
    %v668 = vsel %vm144, %v666, 0
    %670 = vmatpush.msra.mxu0 0.0
    %671 = vmatpush.msra.mxu0 0.0
    %672 = vmatpush.msra.mxu0 0.0
    %673 = vmatpush.msra.mxu0 0.0
    %674 = vmatpush.msra.mxu0 0.0
    %675 = vmatpush.msra.mxu0 0.0
    %676 = vmatpush.msra.mxu0 0.0
    %677 = vmatpush.msra.mxu0 0.0
    %678 = vmatpush.msra.mxu0 0.0
    %679 = vmatpush.msra.mxu0 0.0
    %680 = vmatpush.msra.mxu0 0.0
    %681 = vmatpush.msra.mxu0 0.0
    %682 = vmatpush.msra.mxu0 %v141
    %683 = vmatpush.msra.mxu0 %v140
    %684 = vmatpush.msra.mxu0 %v139
    %685 = vmatpush.msra.mxu0 %v138
    %686 = vmatmul.f32.gmra.mxu0 %v668
    %v687 = vpop.f32.mrf.mxu0
    %v688 = vadd.f32 0.0, %v687
    %689 = vdwg.mxu0
    %s690 = scalar_lea.vmem [#allocation3], 56
    %v691 = vld [vmem:[%s690] sm:$0xff]
    %v692 = vadd.f32 %v691, %v688
    %v693 = vxor.u32 %v692, 2147483648
    %v694 = vmul.f32 %v693, 1.442695
    %v695 = vpow.pop %v694
    %v696 = vadd.f32 %v695, 1.0
    %v697 = vrcp.pop %v696
    %v698 = vmul.f32 %v696, %v697
    %v699 = vsub.f32 1.0, %v698
    %v700 = vmul.f32 %v697, %v699
    %v701 = vadd.f32 %v697, %v700
    %vm702 = vweird.f32 %v696
    %vm703 = vweird.f32 %v697
    %vm704 = vmor %vm702, %vm703
    %v705 = vsel %vm704, %v697, %v701
    %v706 = vand.u32 2147483647, %v696
    %vm707 = vcmp.eq.f32.partialorder %v706, 8.507059e+37
    %v708 = vand.u32 %v696, 2147483648
    %v709 = vor.u32 1.1754944e-38, %v708
    %v710 = vsel %vm707, %v709, %v705
    %v711 = vmul.f32 1.0, %v710
    %v712 = vadd.f32 %v688, %v192
    %714 = vrot.lane.b32.xlu0 %v712, 64
    %v715 = vpop.permute.xlu0 %714
    %v717 = vmul.f32 %v711, %v715
    %719 = vrot.lane.b32.xlu0 %v717, 64
    %v720 = vpop.permute.xlu0 %719
    %v722 = vadd.f32 %v691, %v720
    %v723 = vtanh.pop %v722
    %v724 = vsub.f32 1.0, %v711
    %726 = vrot.lane.b32.xlu0 %v723, 96
    %v727 = vpop.permute.xlu0 %726
    %v729 = vmul.f32 %v724, %v727
    %730 = vrot.lane.b32.xlu0 %v666, 32
    %v731 = vpop.permute.xlu0 %730
    %v733 = vmul.f32 %v711, %v731
    %v734 = vadd.f32 %v729, %v733
    %736 = vrot.lane.b32.xlu0 %v734, 96
    %v737 = vpop.permute.xlu0 %736
    %739 = vst.msk [vmem:[#allocation2] sm:$0xff] %vm144, %v737
    // Predicated region
    $region38: #{tpu_custom_call.1} parent=1 // pred_check
      %p740 = pneg %p43
    $region39: #{tpu_custom_call.1} parent=1 // pred_check_branch
      %742 = sbr.rel (%p740) target = $region41
    $region40: #{tpu_custom_call.1} parent=1 // pred_region
      %v743 = vld [vmem:[#allocation2] sm:$0xff]
      %v744 = vld [vmem:[%s5] sm:$0xff]
      %v745 = vld [vmem:[%s5 + $0x8] sm:$0xff]
      %v746 = vld [vmem:[%s5 + $0x10] sm:$0xff]
      %v747 = vld [vmem:[%s5 + $0x18] sm:$0xff]
      %v748 = vld [vmem:[%s6] sm:$0x1]
      %v750 = vperm.slane %v748, 0
      %v753 = vsel %vm144, %v743, 0
      %755 = vmatpush.msra.mxu0 0.0
      %756 = vmatpush.msra.mxu0 0.0
      %757 = vmatpush.msra.mxu0 0.0
      %758 = vmatpush.msra.mxu0 0.0
      %759 = vmatpush.msra.mxu0 0.0
      %760 = vmatpush.msra.mxu0 0.0
      %761 = vmatpush.msra.mxu0 0.0
      %762 = vmatpush.msra.mxu0 0.0
      %763 = vmatpush.msra.mxu0 0.0
      %764 = vmatpush.msra.mxu0 0.0
      %765 = vmatpush.msra.mxu0 0.0
      %766 = vmatpush.msra.mxu0 0.0
      %767 = vmatpush.msra.mxu0 %v747
      %768 = vmatpush.msra.mxu0 %v746
      %769 = vmatpush.msra.mxu0 %v745
      %770 = vmatpush.msra.mxu0 %v744
      %771 = vmatmul.f32.gmra.mxu0 %v753
      %v772 = vpop.f32.mrf.mxu0
      %v773 = vadd.f32 %v750, %v772
      %774 = vdwg.mxu0
      %775 = vst.msk [vmem:[#allocation7] sm:$0xff] %vm63, %v773
    $region41: #{tpu_custom_call.1} parent=1 // pred_fallthru
      _
    // Predicated region
    $region42: #{tpu_custom_call.1} parent=1 // pred_check
      _
    $region43: #{tpu_custom_call.1} parent=1 // pred_check_branch
      %777 = sbr.rel (0) target = $region45
    $region44: #{tpu_custom_call.1} parent=1 // pred_region
      %779 = vsyncadd [#allocation6], 0
      %s781 = sshll.u32 [#allocation7], 4
      %s782 = int_to_ptr.vmem [resolvable:$true] %s781
      %s783 = sshll.u32 %s7, 4
      %s784 = int_to_ptr.hbm [resolvable:$true] %s783
      %786 = dma.vmem_to_hbm [thread:$0]  %s782, 128, %s784, [#allocation6]
    $region45: #{tpu_custom_call.1} parent=1 // pred_fallthru
      _
    // Predicated region
    $region46: #{tpu_custom_call.1} parent=1 // pred_check
      _
    $region47: #{tpu_custom_call.1} parent=1 // pred_check_branch
      %788 = sbr.rel (0) target = $region49
    $region48: #{tpu_custom_call.1} parent=1 // pred_region
      %790 = dma.done [#allocation6], 128
    $region49: #{tpu_custom_call.1} parent=1 // pred_fallthru
      _
    %791 = vsyncpa [#allocation5], 1
    %792 = vsyncpa [#allocation6], 1

// kernel: tpu_custom_call.1
$region0: #{tpu_custom_call.1}
  #allocation0 [shape = 'u32[]', space=smem, size = 0x4, offset = 0x4, fixed_abs, tag = 'smem constant byte address 0x4 - core index']
  #allocation1 [shape = 'u32[72,128]{1,0:T(1,128)}', space=vmem, size = 0x9000, scoped, tag = 'internal scratch']
  #allocation2 [shape = 'f32[8,32]{1,0:T(8,128)}', space=vmem, size = 0x1000, scoped, tag = 'scratch operand']
  #allocation3 [shape = 'f32[8,8,96]{2,1,0:T(8,128)}', space=vmem, size = 0x8000, scoped, tag = 'scratch operand']
  %s0 = inlined_call_operand.hbm [shape: f32[8,8,16], index: 0, kind: input, shape index: {}]
  %s1 = inlined_call_operand.vmem [shape: f32[16,96], index: 1, kind: input, shape index: {}]
  %s2 = inlined_call_operand.vmem [shape: f32[32,96], index: 2, kind: input, shape index: {}]
  %s3 = inlined_call_operand.vmem [shape: f32[1,96], index: 3, kind: input, shape index: {}]
  %s4 = inlined_call_operand.vmem [shape: f32[1,32], index: 4, kind: input, shape index: {}]
  %s5 = inlined_call_operand.vmem [shape: f32[32,16], index: 5, kind: input, shape index: {}]
  %s6 = inlined_call_operand.vmem [shape: f32[1,16], index: 6, kind: input, shape index: {}]
  %s7 = inlined_call_operand.hbm [shape: f32[8,16], index: 7, kind: output, shape index: {}]
  %s8 = sld [smem:[#allocation0]]
  $region50: #{tpu_custom_call.1} parent=0
    _
  %s10 = ssub.s32 1, %s8
  %s11 = scalar_select 0, %s10, %s8
  $region1: #{tpu_custom_call.1} parent=0
    #allocation4 [shape = 'u8[32768]{0}', space=vmem, size = 0x8000, scoped, tag = 'input window, operand 0, single buffered']
    #allocation5 [shape = 's32[1]{0}', space=sflag, size = 0x4, scoped, tag = 'scoped memory for tpu_custom_call.1']
    #allocation6 [shape = 's32[1]{0}', space=sflag, size = 0x4, scoped, tag = 'scoped memory for tpu_custom_call.1']
    #allocation7 [shape = 'u8[4096]{0}', space=vmem, size = 0x1000, scoped, tag = 'output window, operand 0, single buffered']
    %12 = vsyncpa [#allocation5], 0
    %13 = vsyncpa [#allocation6], 0
    // Predicated region
    $region2: #{tpu_custom_call.1} parent=1 // pred_check
      _
    $region3: #{tpu_custom_call.1} parent=1 // pred_check_branch
      %15 = sbr.rel (0) target = $region5
    $region4: #{tpu_custom_call.1} parent=1 // pred_region
      %17 = vsyncadd [#allocation5], 0
      %s18 = sshll.u32 %s0, 4
      %s19 = int_to_ptr.hbm [resolvable:$true] %s18
      %s20 = sshll.u32 [#allocation4], 4
      %s21 = int_to_ptr.vmem [resolvable:$true] %s20
      %26 = dma.hbm_to_vmem [thread:$0]  %s19, 1024, %s21, [#allocation5], 128, 128, 8
    $region5: #{tpu_custom_call.1} parent=1 // pred_fallthru
      _
    // Predicated region
    $region6: #{tpu_custom_call.1} parent=1 // pred_check
      _
    $region7: #{tpu_custom_call.1} parent=1 // pred_check_branch
      %28 = sbr.rel (0) target = $region9
    $region8: #{tpu_custom_call.1} parent=1 // pred_region
      _
    $region9: #{tpu_custom_call.1} parent=1 // pred_fallthru
      _
    // Predicated region
    $region10: #{tpu_custom_call.1} parent=1 // pred_check
      _
    $region11: #{tpu_custom_call.1} parent=1 // pred_check_branch
      %30 = sbr.rel (0) target = $region13
    $region12: #{tpu_custom_call.1} parent=1 // pred_region
      _
    $region13: #{tpu_custom_call.1} parent=1 // pred_fallthru
      _
    // Predicated region
    $region14: #{tpu_custom_call.1} parent=1 // pred_check
      _
    $region15: #{tpu_custom_call.1} parent=1 // pred_check_branch
      %32 = sbr.rel (0) target = $region17
    $region16: #{tpu_custom_call.1} parent=1 // pred_region
      _
    $region17: #{tpu_custom_call.1} parent=1 // pred_fallthru
      _
    // Predicated region
    $region18: #{tpu_custom_call.1} parent=1 // pred_check
      _
    $region19: #{tpu_custom_call.1} parent=1 // pred_check_branch
      %34 = sbr.rel (0) target = $region21
    $region20: #{tpu_custom_call.1} parent=1 // pred_region
      _
    $region21: #{tpu_custom_call.1} parent=1 // pred_fallthru
      _
    // Predicated region
    $region22: #{tpu_custom_call.1} parent=1 // pred_check
      _
    $region23: #{tpu_custom_call.1} parent=1 // pred_check_branch
      %36 = sbr.rel (0) target = $region25
    $region24: #{tpu_custom_call.1} parent=1 // pred_region
      _
    $region25: #{tpu_custom_call.1} parent=1 // pred_fallthru
      _
    // Predicated region
    $region26: #{tpu_custom_call.1} parent=1 // pred_check
      _
    $region27: #{tpu_custom_call.1} parent=1 // pred_check_branch
      %38 = sbr.rel (0) target = $region29
    $region28: #{tpu_custom_call.1} parent=1 // pred_region
      _
    $region29: #{tpu_custom_call.1} parent=1 // pred_fallthru
      _
    // Predicated region
    $region30: #{tpu_custom_call.1} parent=1 // pred_check
      _
    $region31: #{tpu_custom_call.1} parent=1 // pred_check_branch
      %40 = sbr.rel (0) target = $region33
    $region32: #{tpu_custom_call.1} parent=1 // pred_region
      %42 = dma.done [#allocation5], 1024
    $region33: #{tpu_custom_call.1} parent=1 // pred_fallthru
      _
    %p43 = scmp.eq.s32.totalorder 0, 0
    // Predicated region
    $region34: #{tpu_custom_call.1} parent=1 // pred_check
      %p44 = pneg %p43
    $region35: #{tpu_custom_call.1} parent=1 // pred_check_branch
      %46 = sbr.rel (%p44) target = $region37
    $region36: #{tpu_custom_call.1} parent=1 // pred_region
      %vm47 = vcmask 261120
      %48 = vst.msk [vmem:[#allocation2] sm:$0xff] %vm47, 0.0
    $region37: #{tpu_custom_call.1} parent=1 // pred_fallthru
      _
    %v49 = vld [vmem:[#allocation4] sm:$0xff]
    %v50 = vld [vmem:[#allocation4 + $0x8] sm:$0xff]
    %v51 = vld [vmem:[#allocation4 + $0x10] sm:$0xff]
    %v52 = vld [vmem:[#allocation4 + $0x18] sm:$0xff]
    %v53 = vld [vmem:[#allocation4 + $0x20] sm:$0xff]
    %v54 = vld [vmem:[#allocation4 + $0x28] sm:$0xff]
    %v55 = vld [vmem:[#allocation4 + $0x30] sm:$0xff]
    %v56 = vld [vmem:[#allocation4 + $0x38] sm:$0xff]
    %v57 = vld [vmem:[%s1] sm:$0xff]
    %v58 = vld [vmem:[%s1 + $0x8] sm:$0xff]
    %v59 = vld [vmem:[%s3] sm:$0x1]
    %v61 = vperm.slane %v59, 0
    %vm63 = vcmask 130048
    %v65 = vsel %vm63, %v49, 0
    %v68 = vsel %vm63, %v50, 0
    %v71 = vsel %vm63, %v51, 0
    %v74 = vsel %vm63, %v52, 0
    %v77 = vsel %vm63, %v53, 0
    %v80 = vsel %vm63, %v54, 0
    %v83 = vsel %vm63, %v55, 0
    %v86 = vsel %vm63, %v56, 0
    %88 = vmatpush.msra.mxu0 0.0
    %89 = vmatpush.msra.mxu0 0.0
    %90 = vmatpush.msra.mxu0 0.0
    %91 = vmatpush.msra.mxu0 0.0
    %92 = vmatpush.msra.mxu0 0.0
    %93 = vmatpush.msra.mxu0 0.0
    %94 = vmatpush.msra.mxu0 0.0
    %95 = vmatpush.msra.mxu0 0.0
    %96 = vmatpush.msra.mxu0 0.0
    %97 = vmatpush.msra.mxu0 0.0
    %98 = vmatpush.msra.mxu0 0.0
    %99 = vmatpush.msra.mxu0 0.0
    %100 = vmatpush.msra.mxu0 0.0
    %101 = vmatpush.msra.mxu0 0.0
    %102 = vmatpush.msra.mxu0 %v58
    %103 = vmatpush.msra.mxu0 %v57
    %104 = vmatmul.f32.gmra.mxu0 %v65
    %v105 = vpop.f32.mrf.mxu0
    %v106 = vadd.f32 %v61, %v105
    %107 = vmatmul.f32.gmra.mxu0 %v68
    %v108 = vpop.f32.mrf.mxu0
    %v109 = vadd.f32 %v61, %v108
    %110 = vmatmul.f32.gmra.mxu0 %v71
    %v111 = vpop.f32.mrf.mxu0
    %v112 = vadd.f32 %v61, %v111
    %113 = vmatmul.f32.gmra.mxu0 %v74
    %v114 = vpop.f32.mrf.mxu0
    %v115 = vadd.f32 %v61, %v114
    %116 = vmatmul.f32.gmra.mxu0 %v77
    %v117 = vpop.f32.mrf.mxu0
    %v118 = vadd.f32 %v61, %v117
    %119 = vmatmul.f32.gmra.mxu0 %v80
    %v120 = vpop.f32.mrf.mxu0
    %v121 = vadd.f32 %v61, %v120
    %122 = vmatmul.f32.gmra.mxu0 %v83
    %v123 = vpop.f32.mrf.mxu0
    %v124 = vadd.f32 %v61, %v123
    %125 = vmatmul.f32.gmra.mxu0 %v86
    %v126 = vpop.f32.mrf.mxu0
    %v127 = vadd.f32 %v61, %v126
    %128 = vdwg.mxu0
    %vm129 = vcmask 785408
    %130 = vst.msk [vmem:[#allocation3] sm:$0xff] %vm129, %v106
    %131 = vst.msk [vmem:[#allocation3 + $0x8] sm:$0xff] %vm129, %v109
    %132 = vst.msk [vmem:[#allocation3 + $0x10] sm:$0xff] %vm129, %v112
    %133 = vst.msk [vmem:[#allocation3 + $0x18] sm:$0xff] %vm129, %v115
    %134 = vst.msk [vmem:[#allocation3 + $0x20] sm:$0xff] %vm129, %v118
    %135 = vst.msk [vmem:[#allocation3 + $0x28] sm:$0xff] %vm129, %v121
    %136 = vst.msk [vmem:[#allocation3 + $0x30] sm:$0xff] %vm129, %v124
    %137 = vst.msk [vmem:[#allocation3 + $0x38] sm:$0xff] %vm129, %v127
    %v138 = vld [vmem:[%s2] sm:$0xff]
    %v139 = vld [vmem:[%s2 + $0x8] sm:$0xff]
    %v140 = vld [vmem:[%s2 + $0x10] sm:$0xff]
    %v141 = vld [vmem:[%s2 + $0x18] sm:$0xff]
    %v142 = vld [vmem:[%s4] sm:$0x1]
    %v143 = vld [vmem:[#allocation2] sm:$0xff]
    %vm144 = vcmask 261120
    %v146 = vsel %vm144, %v143, 0
    %148 = vmatpush.msra.mxu0 0.0
    %149 = vmatpush.msra.mxu0 0.0
    %150 = vmatpush.msra.mxu0 0.0
    %151 = vmatpush.msra.mxu0 0.0
    %152 = vmatpush.msra.mxu0 0.0
    %153 = vmatpush.msra.mxu0 0.0
    %154 = vmatpush.msra.mxu0 0.0
    %155 = vmatpush.msra.mxu0 0.0
    %156 = vmatpush.msra.mxu0 0.0
    %157 = vmatpush.msra.mxu0 0.0
    %158 = vmatpush.msra.mxu0 0.0
    %159 = vmatpush.msra.mxu0 0.0
    %160 = vmatpush.msra.mxu0 %v141
    %161 = vmatpush.msra.mxu0 %v140
    %162 = vmatpush.msra.mxu0 %v139
    %163 = vmatpush.msra.mxu0 %v138
    %164 = vmatmul.f32.gmra.mxu0 %v146
    %v165 = vpop.f32.mrf.mxu0
    %v166 = vadd.f32 0.0, %v165
    %167 = vdwg.mxu0
    %v168 = vld [vmem:[#allocation3] sm:$0xff]
    %v169 = vadd.f32 %v168, %v166
    %v170 = vxor.u32 %v169, 2147483648
    %v171 = vmul.f32 %v170, 1.442695
    %v172 = vpow.pop %v171
    %v173 = vadd.f32 %v172, 1.0
    %v174 = vrcp.pop %v173
    %v175 = vmul.f32 %v173, %v174
    %v176 = vsub.f32 1.0, %v175
    %v177 = vmul.f32 %v174, %v176
    %v178 = vadd.f32 %v174, %v177
    %vm179 = vweird.f32 %v173
    %vm180 = vweird.f32 %v174
    %vm181 = vmor %vm179, %vm180
    %v182 = vsel %vm181, %v174, %v178
    %v183 = vand.u32 2147483647, %v173
    %vm184 = vcmp.eq.f32.partialorder %v183, 8.507059e+37
    %v185 = vand.u32 %v173, 2147483648
    %v186 = vor.u32 1.1754944e-38, %v185
    %v187 = vsel %vm184, %v186, %v182
    %v188 = vmul.f32 1.0, %v187
    %v190 = vperm.slane %v142, 0
    %191 = vrot.lane.b32.xlu0 %v190, 64
    %v192 = vpop.permute.xlu0 %191
    %v194 = vadd.f32 %v166, %v192
    %196 = vrot.lane.b32.xlu0 %v194, 64
    %v197 = vpop.permute.xlu0 %196
    %v199 = vmul.f32 %v188, %v197
    %201 = vrot.lane.b32.xlu0 %v199, 64
    %v202 = vpop.permute.xlu0 %201
    %v204 = vadd.f32 %v168, %v202
    %v205 = vtanh.pop %v204
    %v206 = vsub.f32 1.0, %v188
    %208 = vrot.lane.b32.xlu0 %v205, 96
    %v209 = vpop.permute.xlu0 %208
    %v211 = vmul.f32 %v206, %v209
    %212 = vrot.lane.b32.xlu0 %v143, 32
    %v213 = vpop.permute.xlu0 %212
    %v215 = vmul.f32 %v188, %v213
    %v216 = vadd.f32 %v211, %v215
    %218 = vrot.lane.b32.xlu0 %v216, 96
    %v219 = vpop.permute.xlu0 %218
    %221 = vst.msk [vmem:[#allocation2] sm:$0xff] %vm144, %v219
    %v222 = vld [vmem:[#allocation2] sm:$0xff]
    %v224 = vsel %vm144, %v222, 0
    %226 = vmatpush.msra.mxu0 0.0
    %227 = vmatpush.msra.mxu0 0.0
    %228 = vmatpush.msra.mxu0 0.0
    %229 = vmatpush.msra.mxu0 0.0
    %230 = vmatpush.msra.mxu0 0.0
    %231 = vmatpush.msra.mxu0 0.0
    %232 = vmatpush.msra.mxu0 0.0
    %233 = vmatpush.msra.mxu0 0.0
    %234 = vmatpush.msra.mxu0 0.0
    %235 = vmatpush.msra.mxu0 0.0
    %236 = vmatpush.msra.mxu0 0.0
    %237 = vmatpush.msra.mxu0 0.0
    %238 = vmatpush.msra.mxu0 %v141
    %239 = vmatpush.msra.mxu0 %v140
    %240 = vmatpush.msra.mxu0 %v139
    %241 = vmatpush.msra.mxu0 %v138
    %242 = vmatmul.f32.gmra.mxu0 %v224
    %v243 = vpop.f32.mrf.mxu0
    %v244 = vadd.f32 0.0, %v243
    %245 = vdwg.mxu0
    %s246 = scalar_lea.vmem [#allocation3], 8
    %v247 = vld [vmem:[%s246] sm:$0xff]
    %v248 = vadd.f32 %v247, %v244
    %v249 = vxor.u32 %v248, 2147483648
    %v250 = vmul.f32 %v249, 1.442695
    %v251 = vpow.pop %v250
    %v252 = vadd.f32 %v251, 1.0
    %v253 = vrcp.pop %v252
    %v254 = vmul.f32 %v252, %v253
    %v255 = vsub.f32 1.0, %v254
    %v256 = vmul.f32 %v253, %v255
    %v257 = vadd.f32 %v253, %v256
    %vm258 = vweird.f32 %v252
    %vm259 = vweird.f32 %v253
    %vm260 = vmor %vm258, %vm259
    %v261 = vsel %vm260, %v253, %v257
    %v262 = vand.u32 2147483647, %v252
    %vm263 = vcmp.eq.f32.partialorder %v262, 8.507059e+37
    %v264 = vand.u32 %v252, 2147483648
    %v265 = vor.u32 1.1754944e-38, %v264
    %v266 = vsel %vm263, %v265, %v261
    %v267 = vmul.f32 1.0, %v266
    %v268 = vadd.f32 %v244, %v192
    %270 = vrot.lane.b32.xlu0 %v268, 64
    %v271 = vpop.permute.xlu0 %270
    %v273 = vmul.f32 %v267, %v271
    %275 = vrot.lane.b32.xlu0 %v273, 64
    %v276 = vpop.permute.xlu0 %275
    %v278 = vadd.f32 %v247, %v276
    %v279 = vtanh.pop %v278
    %v280 = vsub.f32 1.0, %v267
    %282 = vrot.lane.b32.xlu0 %v279, 96
    %v283 = vpop.permute.xlu0 %282
    %v285 = vmul.f32 %v280, %v283
    %286 = vrot.lane.b32.xlu0 %v222, 32
    %v287 = vpop.permute.xlu0 %286
    %v289 = vmul.f32 %v267, %v287
    %v290 = vadd.f32 %v285, %v289
    %292 = vrot.lane.b32.xlu0 %v290, 96
    %v293 = vpop.permute.xlu0 %292
    %295 = vst.msk [vmem:[#allocation2] sm:$0xff] %vm144, %v293
    %v296 = vld [vmem:[#allocation2] sm:$0xff]
    %v298 = vsel %vm144, %v296, 0
    %300 = vmatpush.msra.mxu0 0.0
    %301 = vmatpush.msra.mxu0 0.0
    %302 = vmatpush.msra.mxu0 0.0
    %303 = vmatpush.msra.mxu0 0.0
    %304 = vmatpush.msra.mxu0 0.0
    %305 = vmatpush.msra.mxu0 0.0
    %306 = vmatpush.msra.mxu0 0.0
    %307 = vmatpush.msra.mxu0 0.0
    %308 = vmatpush.msra.mxu0 0.0
    %309 = vmatpush.msra.mxu0 0.0
    %310 = vmatpush.msra.mxu0 0.0
    %311 = vmatpush.msra.mxu0 0.0
    %312 = vmatpush.msra.mxu0 %v141
    %313 = vmatpush.msra.mxu0 %v140
    %314 = vmatpush.msra.mxu0 %v139
    %315 = vmatpush.msra.mxu0 %v138
    %316 = vmatmul.f32.gmra.mxu0 %v298
    %v317 = vpop.f32.mrf.mxu0
    %v318 = vadd.f32 0.0, %v317
    %319 = vdwg.mxu0
    %s320 = scalar_lea.vmem [#allocation3], 16
    %v321 = vld [vmem:[%s320] sm:$0xff]
    %v322 = vadd.f32 %v321, %v318
    %v323 = vxor.u32 %v322, 2147483648
    %v324 = vmul.f32 %v323, 1.442695
    %v325 = vpow.pop %v324
    %v326 = vadd.f32 %v325, 1.0
    %v327 = vrcp.pop %v326
    %v328 = vmul.f32 %v326, %v327
    %v329 = vsub.f32 1.0, %v328
    %v330 = vmul.f32 %v327, %v329
    %v331 = vadd.f32 %v327, %v330
    %vm332 = vweird.f32 %v326
    %vm333 = vweird.f32 %v327
    %vm334 = vmor %vm332, %vm333
    %v335 = vsel %vm334, %v327, %v331
    %v336 = vand.u32 2147483647, %v326
    %vm337 = vcmp.eq.f32.partialorder %v336, 8.507059e+37
    %v338 = vand.u32 %v326, 2147483648
    %v339 = vor.u32 1.1754944e-38, %v338
    %v340 = vsel %vm337, %v339, %v335
    %v341 = vmul.f32 1.0, %v340
    %v342 = vadd.f32 %v318, %v192
    %344 = vrot.lane.b32.xlu0 %v342, 64
    %v345 = vpop.permute.xlu0 %344
    %v347 = vmul.f32 %v341, %v345
    %349 = vrot.lane.b32.xlu0 %v347, 64
    %v350 = vpop.permute.xlu0 %349
    %v352 = vadd.f32 %v321, %v350
    %v353 = vtanh.pop %v352
    %v354 = vsub.f32 1.0, %v341
    %356 = vrot.lane.b32.xlu0 %v353, 96
    %v357 = vpop.permute.xlu0 %356
    %v359 = vmul.f32 %v354, %v357
    %360 = vrot.lane.b32.xlu0 %v296, 32
    %v361 = vpop.permute.xlu0 %360
    %v363 = vmul.f32 %v341, %v361
    %v364 = vadd.f32 %v359, %v363
    %366 = vrot.lane.b32.xlu0 %v364, 96
    %v367 = vpop.permute.xlu0 %366
    %369 = vst.msk [vmem:[#allocation2] sm:$0xff] %vm144, %v367
    %v370 = vld [vmem:[#allocation2] sm:$0xff]
    %v372 = vsel %vm144, %v370, 0
    %374 = vmatpush.msra.mxu0 0.0
    %375 = vmatpush.msra.mxu0 0.0
    %376 = vmatpush.msra.mxu0 0.0
    %377 = vmatpush.msra.mxu0 0.0
    %378 = vmatpush.msra.mxu0 0.0
    %379 = vmatpush.msra.mxu0 0.0
    %380 = vmatpush.msra.mxu0 0.0
    %381 = vmatpush.msra.mxu0 0.0
    %382 = vmatpush.msra.mxu0 0.0
    %383 = vmatpush.msra.mxu0 0.0
    %384 = vmatpush.msra.mxu0 0.0
    %385 = vmatpush.msra.mxu0 0.0
    %386 = vmatpush.msra.mxu0 %v141
    %387 = vmatpush.msra.mxu0 %v140
    %388 = vmatpush.msra.mxu0 %v139
    %389 = vmatpush.msra.mxu0 %v138
    %390 = vmatmul.f32.gmra.mxu0 %v372
    %v391 = vpop.f32.mrf.mxu0
    %v392 = vadd.f32 0.0, %v391
    %393 = vdwg.mxu0
    %s394 = scalar_lea.vmem [#allocation3], 24
    %v395 = vld [vmem:[%s394] sm:$0xff]
    %v396 = vadd.f32 %v395, %v392
    %v397 = vxor.u32 %v396, 2147483648
    %v398 = vmul.f32 %v397, 1.442695
    %v399 = vpow.pop %v398
    %v400 = vadd.f32 %v399, 1.0
    %v401 = vrcp.pop %v400
    %v402 = vmul.f32 %v400, %v401
    %v403 = vsub.f32 1.0, %v402
    %v404 = vmul.f32 %v401, %v403
    %v405 = vadd.f32 %v401, %v404
    %vm406 = vweird.f32 %v400
    %vm407 = vweird.f32 %v401
    %vm408 = vmor %vm406, %vm407
    %v409 = vsel %vm408, %v401, %v405
    %v410 = vand.u32 2147483647, %v400
    %vm411 = vcmp.eq.f32.partialorder %v410, 8.507059e+37
    %v412 = vand.u32 %v400, 2147483648
    %v413 = vor.u32 1.1754944e-38, %v412
    %v414 = vsel %vm411, %v413, %v409
    %v415 = vmul.f32 1.0, %v414
    %v416 = vadd.f32 %v392, %v192
    %418 = vrot.lane.b32.xlu0 %v416, 64
    %v419 = vpop.permute.xlu0 %418
    %v421 = vmul.f32 %v415, %v419
    %423 = vrot.lane.b32.xlu0 %v421, 64
    %v424 = vpop.permute.xlu0 %423
    %v426 = vadd.f32 %v395, %v424
    %v427 = vtanh.pop %v426
    %v428 = vsub.f32 1.0, %v415
    %430 = vrot.lane.b32.xlu0 %v427, 96
    %v431 = vpop.permute.xlu0 %430
    %v433 = vmul.f32 %v428, %v431
    %434 = vrot.lane.b32.xlu0 %v370, 32
    %v435 = vpop.permute.xlu0 %434
    %v437 = vmul.f32 %v415, %v435
    %v438 = vadd.f32 %v433, %v437
    %440 = vrot.lane.b32.xlu0 %v438, 96
    %v441 = vpop.permute.xlu0 %440
    %443 = vst.msk [vmem:[#allocation2] sm:$0xff] %vm144, %v441
    %v444 = vld [vmem:[#allocation2] sm:$0xff]
    %v446 = vsel %vm144, %v444, 0
    %448 = vmatpush.msra.mxu0 0.0
    %449 = vmatpush.msra.mxu0 0.0
    %450 = vmatpush.msra.mxu0 0.0
    %451 = vmatpush.msra.mxu0 0.0
    %452 = vmatpush.msra.mxu0 0.0
    %453 = vmatpush.msra.mxu0 0.0
    %454 = vmatpush.msra.mxu0 0.0
    %455 = vmatpush.msra.mxu0 0.0
    %456 = vmatpush.msra.mxu0 0.0
    %457 = vmatpush.msra.mxu0 0.0
    %458 = vmatpush.msra.mxu0 0.0
    %459 = vmatpush.msra.mxu0 0.0
    %460 = vmatpush.msra.mxu0 %v141
    %461 = vmatpush.msra.mxu0 %v140
    %462 = vmatpush.msra.mxu0 %v139
    %463 = vmatpush.msra.mxu0 %v138
    %464 = vmatmul.f32.gmra.mxu0 %v446
    %v465 = vpop.f32.mrf.mxu0
    %v466 = vadd.f32 0.0, %v465
    %467 = vdwg.mxu0
    %s468 = scalar_lea.vmem [#allocation3], 32
    %v469 = vld [vmem:[%s468] sm:$0xff]
    %v470 = vadd.f32 %v469, %v466
    %v471 = vxor.u32 %v470, 2147483648
    %v472 = vmul.f32 %v471, 1.442695
    %v473 = vpow.pop %v472
    %v474 = vadd.f32 %v473, 1.0
    %v475 = vrcp.pop %v474
    %v476 = vmul.f32 %v474, %v475
    %v477 = vsub.f32 1.0, %v476
    %v478 = vmul.f32 %v475, %v477
    %v479 = vadd.f32 %v475, %v478
    %vm480 = vweird.f32 %v474
    %vm481 = vweird.f32 %v475
    %vm482 = vmor %vm480, %vm481
    %v483 = vsel %vm482, %v475, %v479
    %v484 = vand.u32 2147483647, %v474
    %vm485 = vcmp.eq.f32.partialorder %v484, 8.507059e+37
    %v486 = vand.u32 %v474, 2147483648
    %v487 = vor.u32 1.1754944e-38, %v486
    %v488 = vsel %vm485, %v487, %v483
    %v489 = vmul.f32 1.0, %v488
    %v490 = vadd.f32 %v466, %v192
    %492 = vrot.lane.b32.xlu0 %v490, 64
    %v493 = vpop.permute.xlu0 %492
    %v495 = vmul.f32 %v489, %v493
    %497 = vrot.lane.b32.xlu0 %v495, 64
    %v498 = vpop.permute.xlu0 %497
    %v500 = vadd.f32 %v469, %v498
    %v501 = vtanh.pop %v500
    %v502 = vsub.f32 1.0, %v489
    %504 = vrot.lane.b32.xlu0 %v501, 96
    %v505 = vpop.permute.xlu0 %504
    %v507 = vmul.f32 %v502, %v505
    %508 = vrot.lane.b32.xlu0 %v444, 32
    %v509 = vpop.permute.xlu0 %508
    %v511 = vmul.f32 %v489, %v509
    %v512 = vadd.f32 %v507, %v511
    %514 = vrot.lane.b32.xlu0 %v512, 96
    %v515 = vpop.permute.xlu0 %514
    %517 = vst.msk [vmem:[#allocation2] sm:$0xff] %vm144, %v515
    %v518 = vld [vmem:[#allocation2] sm:$0xff]
    %v520 = vsel %vm144, %v518, 0
    %522 = vmatpush.msra.mxu0 0.0
    %523 = vmatpush.msra.mxu0 0.0
    %524 = vmatpush.msra.mxu0 0.0
    %525 = vmatpush.msra.mxu0 0.0
    %526 = vmatpush.msra.mxu0 0.0
    %527 = vmatpush.msra.mxu0 0.0
    %528 = vmatpush.msra.mxu0 0.0
    %529 = vmatpush.msra.mxu0 0.0
    %530 = vmatpush.msra.mxu0 0.0
    %531 = vmatpush.msra.mxu0 0.0
    %532 = vmatpush.msra.mxu0 0.0
    %533 = vmatpush.msra.mxu0 0.0
    %534 = vmatpush.msra.mxu0 %v141
    %535 = vmatpush.msra.mxu0 %v140
    %536 = vmatpush.msra.mxu0 %v139
    %537 = vmatpush.msra.mxu0 %v138
    %538 = vmatmul.f32.gmra.mxu0 %v520
    %v539 = vpop.f32.mrf.mxu0
    %v540 = vadd.f32 0.0, %v539
    %541 = vdwg.mxu0
    %s542 = scalar_lea.vmem [#allocation3], 40
    %v543 = vld [vmem:[%s542] sm:$0xff]
    %v544 = vadd.f32 %v543, %v540
    %v545 = vxor.u32 %v544, 2147483648
    %v546 = vmul.f32 %v545, 1.442695
    %v547 = vpow.pop %v546
    %v548 = vadd.f32 %v547, 1.0
    %v549 = vrcp.pop %v548
    %v550 = vmul.f32 %v548, %v549
    %v551 = vsub.f32 1.0, %v550
    %v552 = vmul.f32 %v549, %v551
    %v553 = vadd.f32 %v549, %v552
    %vm554 = vweird.f32 %v548
    %vm555 = vweird.f32 %v549
    %vm556 = vmor %vm554, %vm555
    %v557 = vsel %vm556, %v549, %v553
    %v558 = vand.u32 2147483647, %v548
    %vm559 = vcmp.eq.f32.partialorder %v558, 8.507059e+37
    %v560 = vand.u32 %v548, 2147483648
    %v561 = vor.u32 1.1754944e-38, %v560
    %v562 = vsel %vm559, %v561, %v557
    %v563 = vmul.f32 1.0, %v562
    %v564 = vadd.f32 %v540, %v192
    %566 = vrot.lane.b32.xlu0 %v564, 64
    %v567 = vpop.permute.xlu0 %566
    %v569 = vmul.f32 %v563, %v567
    %571 = vrot.lane.b32.xlu0 %v569, 64
    %v572 = vpop.permute.xlu0 %571
    %v574 = vadd.f32 %v543, %v572
    %v575 = vtanh.pop %v574
    %v576 = vsub.f32 1.0, %v563
    %578 = vrot.lane.b32.xlu0 %v575, 96
    %v579 = vpop.permute.xlu0 %578
    %v581 = vmul.f32 %v576, %v579
    %582 = vrot.lane.b32.xlu0 %v518, 32
    %v583 = vpop.permute.xlu0 %582
    %v585 = vmul.f32 %v563, %v583
    %v586 = vadd.f32 %v581, %v585
    %588 = vrot.lane.b32.xlu0 %v586, 96
    %v589 = vpop.permute.xlu0 %588
    %591 = vst.msk [vmem:[#allocation2] sm:$0xff] %vm144, %v589
    %v592 = vld [vmem:[#allocation2] sm:$0xff]
    %v594 = vsel %vm144, %v592, 0
    %596 = vmatpush.msra.mxu0 0.0
    %597 = vmatpush.msra.mxu0 0.0
    %598 = vmatpush.msra.mxu0 0.0
    %599 = vmatpush.msra.mxu0 0.0
    %600 = vmatpush.msra.mxu0 0.0
    %601 = vmatpush.msra.mxu0 0.0
    %602 = vmatpush.msra.mxu0 0.0
    %603 = vmatpush.msra.mxu0 0.0
    %604 = vmatpush.msra.mxu0 0.0
    %605 = vmatpush.msra.mxu0 0.0
    %606 = vmatpush.msra.mxu0 0.0
    %607 = vmatpush.msra.mxu0 0.0
    %608 = vmatpush.msra.mxu0 %v141
    %609 = vmatpush.msra.mxu0 %v140
    %610 = vmatpush.msra.mxu0 %v139
    %611 = vmatpush.msra.mxu0 %v138
    %612 = vmatmul.f32.gmra.mxu0 %v594
    %v613 = vpop.f32.mrf.mxu0
    %v614 = vadd.f32 0.0, %v613
    %615 = vdwg.mxu0
    %s616 = scalar_lea.vmem [#allocation3], 48
    %v617 = vld [vmem:[%s616] sm:$0xff]
    %v618 = vadd.f32 %v617, %v614
    %v619 = vxor.u32 %v618, 2147483648
    %v620 = vmul.f32 %v619, 1.442695
    %v621 = vpow.pop %v620
    %v622 = vadd.f32 %v621, 1.0
    %v623 = vrcp.pop %v622
    %v624 = vmul.f32 %v622, %v623
    %v625 = vsub.f32 1.0, %v624
    %v626 = vmul.f32 %v623, %v625
    %v627 = vadd.f32 %v623, %v626
    %vm628 = vweird.f32 %v622
    %vm629 = vweird.f32 %v623
    %vm630 = vmor %vm628, %vm629
    %v631 = vsel %vm630, %v623, %v627
    %v632 = vand.u32 2147483647, %v622
    %vm633 = vcmp.eq.f32.partialorder %v632, 8.507059e+37
    %v634 = vand.u32 %v622, 2147483648
    %v635 = vor.u32 1.1754944e-38, %v634
    %v636 = vsel %vm633, %v635, %v631
    %v637 = vmul.f32 1.0, %v636
    %v638 = vadd.f32 %v614, %v192
    %640 = vrot.lane.b32.xlu0 %v638, 64
    %v641 = vpop.permute.xlu0 %640
    %v643 = vmul.f32 %v637, %v641
    %645 = vrot.lane.b32.xlu0 %v643, 64
    %v646 = vpop.permute.xlu0 %645
    %v648 = vadd.f32 %v617, %v646
    %v649 = vtanh.pop %v648
    %v650 = vsub.f32 1.0, %v637
    %652 = vrot.lane.b32.xlu0 %v649, 96
    %v653 = vpop.permute.xlu0 %652
    %v655 = vmul.f32 %v650, %v653
    %656 = vrot.lane.b32.xlu0 %v592, 32
    %v657 = vpop.permute.xlu0 %656
    %v659 = vmul.f32 %v637, %v657
    %v660 = vadd.f32 %v655, %v659
    %662 = vrot.lane.b32.xlu0 %v660, 96
    %v663 = vpop.permute.xlu0 %662
    %665 = vst.msk [vmem:[#allocation2] sm:$0xff] %vm144, %v663
    %v666 = vld [vmem:[#allocation2] sm:$0xff]
    %v668 = vsel %vm144, %v666, 0
    %670 = vmatpush.msra.mxu0 0.0
    %671 = vmatpush.msra.mxu0 0.0
    %672 = vmatpush.msra.mxu0 0.0
    %673 = vmatpush.msra.mxu0 0.0
    %674 = vmatpush.msra.mxu0 0.0
    %675 = vmatpush.msra.mxu0 0.0
    %676 = vmatpush.msra.mxu0 0.0
    %677 = vmatpush.msra.mxu0 0.0
    %678 = vmatpush.msra.mxu0 0.0
    %679 = vmatpush.msra.mxu0 0.0
    %680 = vmatpush.msra.mxu0 0.0
    %681 = vmatpush.msra.mxu0 0.0
    %682 = vmatpush.msra.mxu0 %v141
    %683 = vmatpush.msra.mxu0 %v140
    %684 = vmatpush.msra.mxu0 %v139
    %685 = vmatpush.msra.mxu0 %v138
    %686 = vmatmul.f32.gmra.mxu0 %v668
    %v687 = vpop.f32.mrf.mxu0
    %v688 = vadd.f32 0.0, %v687
    %689 = vdwg.mxu0
    %s690 = scalar_lea.vmem [#allocation3], 56
    %v691 = vld [vmem:[%s690] sm:$0xff]
    %v692 = vadd.f32 %v691, %v688
    %v693 = vxor.u32 %v692, 2147483648
    %v694 = vmul.f32 %v693, 1.442695
    %v695 = vpow.pop %v694
    %v696 = vadd.f32 %v695, 1.0
    %v697 = vrcp.pop %v696
    %v698 = vmul.f32 %v696, %v697
    %v699 = vsub.f32 1.0, %v698
    %v700 = vmul.f32 %v697, %v699
    %v701 = vadd.f32 %v697, %v700
    %vm702 = vweird.f32 %v696
    %vm703 = vweird.f32 %v697
    %vm704 = vmor %vm702, %vm703
    %v705 = vsel %vm704, %v697, %v701
    %v706 = vand.u32 2147483647, %v696
    %vm707 = vcmp.eq.f32.partialorder %v706, 8.507059e+37
    %v708 = vand.u32 %v696, 2147483648
    %v709 = vor.u32 1.1754944e-38, %v708
    %v710 = vsel %vm707, %v709, %v705
    %v711 = vmul.f32 1.0, %v710
    %v712 = vadd.f32 %v688, %v192
    %714 = vrot.lane.b32.xlu0 %v712, 64
    %v715 = vpop.permute.xlu0 %714
    %v717 = vmul.f32 %v711, %v715
    %719 = vrot.lane.b32.xlu0 %v717, 64
    %v720 = vpop.permute.xlu0 %719
    %v722 = vadd.f32 %v691, %v720
    %v723 = vtanh.pop %v722
    %v724 = vsub.f32 1.0, %v711
    %726 = vrot.lane.b32.xlu0 %v723, 96
    %v727 = vpop.permute.xlu0 %726
    %v729 = vmul.f32 %v724, %v727
    %730 = vrot.lane.b32.xlu0 %v666, 32
    %v731 = vpop.permute.xlu0 %730
    %v733 = vmul.f32 %v711, %v731
    %v734 = vadd.f32 %v729, %v733
    %736 = vrot.lane.b32.xlu0 %v734, 96
    %v737 = vpop.permute.xlu0 %736
    %739 = vst.msk [vmem:[#allocation2] sm:$0xff] %vm144, %v737
    // Predicated region
    $region38: #{tpu_custom_call.1} parent=1 // pred_check
      %p740 = pneg %p43
    $region39: #{tpu_custom_call.1} parent=1 // pred_check_branch
      %742 = sbr.rel (%p740) target = $region41
    $region40: #{tpu_custom_call.1} parent=1 // pred_region
      %v743 = vld [vmem:[#allocation2] sm:$0xff]
      %v744 = vld [vmem:[%s5] sm:$0xff]
      %v745 = vld [vmem:[%s5 + $0x8] sm:$0xff]
      %v746 = vld [vmem:[%s5 + $0x10] sm:$0xff]
      %v747 = vld [vmem:[%s5 + $0x18] sm:$0xff]
      %v748 = vld [vmem:[%s6] sm:$0x1]
      %v750 = vperm.slane %v748, 0
      %v753 = vsel %vm144, %v743, 0
      %755 = vmatpush.msra.mxu0 0.0
      %756 = vmatpush.msra.mxu0 0.0
      %757 = vmatpush.msra.mxu0 0.0
      %758 = vmatpush.msra.mxu0 0.0
      %759 = vmatpush.msra.mxu0 0.0
      %760 = vmatpush.msra.mxu0 0.0
      %761 = vmatpush.msra.mxu0 0.0
      %762 = vmatpush.msra.mxu0 0.0
      %763 = vmatpush.msra.mxu0 0.0
      %764 = vmatpush.msra.mxu0 0.0
      %765 = vmatpush.msra.mxu0 0.0
      %766 = vmatpush.msra.mxu0 0.0
      %767 = vmatpush.msra.mxu0 %v747
      %768 = vmatpush.msra.mxu0 %v746
      %769 = vmatpush.msra.mxu0 %v745
      %770 = vmatpush.msra.mxu0 %v744
      %771 = vmatmul.f32.gmra.mxu0 %v753
      %v772 = vpop.f32.mrf.mxu0
      %v773 = vadd.f32 %v750, %v772
      %774 = vdwg.mxu0
      %775 = vst.msk [vmem:[#allocation7] sm:$0xff] %vm63, %v773
    $region41: #{tpu_custom_call.1} parent=1 // pred_fallthru
      _
    // Predicated region
    $region42: #{tpu_custom_call.1} parent=1 // pred_check
      _
    $region43: #{tpu_custom_call.1} parent=1 // pred_check_branch
      %777 = sbr.rel (0) target = $region45
    $region44: #{tpu_custom_call.1} parent=1 // pred_region
      %779 = vsyncadd [#allocation6], 0
      %s781 = sshll.u32 [#allocation7], 4
      %s782 = int_to_ptr.vmem [resolvable:$true] %s781
      %s783 = sshll.u32 %s7, 4
      %s784 = int_to_ptr.hbm [resolvable:$true] %s783
      %786 = dma.vmem_to_hbm [thread:$0]  %s782, 128, %s784, [#allocation6]
    $region45: #{tpu_custom_call.1} parent=1 // pred_fallthru
      _
    // Predicated region
    $region46: #{tpu_custom_call.1} parent=1 // pred_check
      _
    $region47: #{tpu_custom_call.1} parent=1 // pred_check_branch
      %788 = sbr.rel (0) target = $region49
    $region48: #{tpu_custom_call.1} parent=1 // pred_region
      %790 = dma.done [#allocation6], 128
    $region49: #{tpu_custom_call.1} parent=1 // pred_fallthru
      _
    %791 = vsyncpa [#allocation5], 1
    %792 = vsyncpa [#allocation6], 1

</llo_original>
